<compile_context>
chip_gen: v7x
topology: tpu7x:2x2x1
jax: 0.10.0
libtpu: 0.0.40
codegen_flags: <defaults>
</compile_context>

<pallas_src>
import functools
import math

import jax
import jax.numpy as jnp
from jax.experimental import pallas as pl
from jax.experimental.pallas import tpu as pltpu


# ----------------------------- Pallas kernel -----------------------------

def _rezero_linattn_kernel(x_ref, wqkv_ref, wout_ref, bout_ref, mask_ref, g_ref,
                           o_ref, *, hd):
    """One batch element: o = LinearAttention(x) * g, all fused.

    x_ref   : (1, n, C)  f32 activations (n = H*W, C = dim)
    wqkv_ref: (C, 3*hd)  bf16, columns ordered (qkv, head, c)  [torch Conv2d 1x1 weight]
    wout_ref: (hd, C)    bf16
    bout_ref: (1, C)     f32
    mask_ref: (hd, hd)   f32 block-diagonal per-head mask
    g_ref   : (1, 1)     f32 rezero gain
    """
    n, C = x_ref.shape[1], x_ref.shape[2]
    x = x_ref[0]                                                    # (n, C) f32

    # qkv projection: one lane-dense matmul (bf16 inputs, f32 accumulate).
    qkv = jnp.dot(x.astype(jnp.bfloat16), wqkv_ref[...],
                  preferred_element_type=jnp.float32)               # (n, 3*hd)
    q = qkv[:, 0 * hd:1 * hd]
    k = qkv[:, 1 * hd:2 * hd]
    v = qkv[:, 2 * hd:3 * hd]

    # torch: k.softmax(dim=-1) on (b, heads, c, n) == softmax over the spatial axis,
    # i.e. over the rows of the (n, heads*dh) slab, independently per column.
    k = jnp.exp(k - jnp.max(k, axis=0, keepdims=True))
    k = k * pl.reciprocal(jnp.sum(k, axis=0, keepdims=True), approx=True)

    # Context for ALL heads at once: full (hd, hd) k^T v contraction, then keep only the
    # per-head (dh, dh) diagonal blocks via the precomputed 0/1 mask.  One 128-lane MXU call
    # instead of `heads` narrow 32-lane ones.
    ctx = jax.lax.dot_general(k.astype(jnp.bfloat16), v.astype(jnp.bfloat16),
                              (((0,), (0,)), ((), ())),
                              preferred_element_type=jnp.float32)   # (hd, hd)
    ctx = ctx * mask_ref[...]

    out = jnp.dot(q.astype(jnp.bfloat16), ctx.astype(jnp.bfloat16),
                  preferred_element_type=jnp.float32)               # (n, hd)

    # output projection + rezero gain, fused (no separate HBM pass for the scale).
    y = jnp.dot(out.astype(jnp.bfloat16), wout_ref[...],
                preferred_element_type=jnp.float32) + bout_ref[...]
    o_ref[...] = (y * g_ref[...]).reshape(1, n, C)


# ----------------------------- wrapper -----------------------------

def rezero_linear_attention(p, x_nchw):
    """Rezero(LinearAttention(dim)) forward.  x_nchw: (B, C, H, W) f32 (PyTorch layout)."""
    B, C, H, W = x_nchw.shape
    heads, dh = p["heads"], p["dim_head"]
    hd = heads * dh
    n = H * W

    # NCHW -> (B, n, C) channels-last token slab (lane-dense last dim).
    x = jnp.transpose(x_nchw, (0, 2, 3, 1)).reshape(B, n, C).astype(jnp.float32)
    wqkv = p["wqkv"].astype(jnp.bfloat16)            # (C, 3*hd)
    wout = p["wout"].astype(jnp.bfloat16)            # (hd, C)
    bout = p["bout"].reshape(1, C).astype(jnp.float32)
    g = p["g"].reshape(1, 1).astype(jnp.float32)

    # block-diagonal mask: keep only same-head (dh, dh) blocks of the full k^T v matrix.
    r = jax.lax.broadcasted_iota(jnp.int32, (hd, hd), 0) // dh
    c = jax.lax.broadcasted_iota(jnp.int32, (hd, hd), 1) // dh
    mask = (r == c).astype(jnp.float32)

    kern = functools.partial(_rezero_linattn_kernel, hd=hd)
    out = pl.pallas_call(
        kern,
        out_shape=jax.ShapeDtypeStruct((B, n, C), jnp.float32),
        grid=(B,),
        in_specs=[
            pl.BlockSpec((1, n, C), lambda b: (b, 0, 0)),
            pl.BlockSpec((C, 3 * hd), lambda b: (0, 0)),
            pl.BlockSpec((hd, C), lambda b: (0, 0)),
            pl.BlockSpec((1, C), lambda b: (0, 0)),
            pl.BlockSpec((hd, hd), lambda b: (0, 0)),
            pl.BlockSpec((1, 1), lambda b: (0, 0)),
        ],
        out_specs=pl.BlockSpec((1, n, C), lambda b: (b, 0, 0)),
        compiler_params=pltpu.CompilerParams(dimension_semantics=("parallel",)),
    )(x, wqkv, wout, bout, mask, g)
    return jnp.transpose(out.reshape(B, H, W, C), (0, 3, 1, 2))     # back to NCHW


# ----------------------------- params & reference -----------------------------

def init_rezero_linattn(key, dim, heads=4, dim_head=32):
    k1, k2, k3 = jax.random.split(key, 3)
    hd = heads * dim_head
    sq = 1.0 / math.sqrt(dim)        # Conv2d(dim, 3*hd, 1, bias=False) init bound
    so = 1.0 / math.sqrt(hd)         # Conv2d(hd, dim, 1) init bound
    return {
        "wqkv": jax.random.uniform(k1, (dim, 3 * hd), jnp.float32, -sq, sq),
        "wout": jax.random.uniform(k2, (hd, dim), jnp.float32, -so, so),
        "bout": jax.random.uniform(k3, (dim,), jnp.float32, -so, so),
        "g": jnp.zeros((1,), jnp.float32),      # Rezero: nn.Parameter(torch.zeros(1))
        "heads": heads, "dim_head": dim_head,
    }


def rezero_linear_attention_ref(p, x_nchw):
    """Pure-JAX f32 reference mirroring the PyTorch Rezero(LinearAttention) forward."""
    B, C, H, W = x_nchw.shape
    heads, dh = p["heads"], p["dim_head"]
    hd = heads * dh
    n = H * W
    x = jnp.transpose(x_nchw, (0, 2, 3, 1)).reshape(B, n, C)
    qkv = x @ p["wqkv"]                                    # (B, n, 3*hd)
    q, k, v = qkv[..., :hd], qkv[..., hd:2 * hd], qkv[..., 2 * hd:]

    def bhdn(t):  # (B, n, heads*dh) -> (B, heads, dh, n)   (torch rearrange layout)
        return jnp.transpose(t.reshape(B, n, heads, dh), (0, 2, 3, 1))

    q, k, v = bhdn(q), bhdn(k), bhdn(v)
    k = jax.nn.softmax(k, axis=-1)                         # over the spatial axis
    ctx = jnp.einsum('bhdn,bhen->bhde', k, v)
    out = jnp.einsum('bhde,bhdn->bhen', ctx, q)
    out = jnp.transpose(out, (0, 3, 1, 2)).reshape(B, n, hd)
    y = out @ p["wout"] + p["bout"]
    y = y * p["g"][0]                                      # rezero gain
    return jnp.transpose(y.reshape(B, H, W, C), (0, 3, 1, 2))


# ----------------------------- demo / self-check -----------------------------

if __name__ == "__main__":
    key = jax.random.PRNGKey(0)
    kp, kx = jax.random.split(key)
    B, C, H, W = 2, 128, 16, 16            # C = heads*dim_head = 128 -> fully lane-dense
    params = init_rezero_linattn(kp, C, heads=4, dim_head=32)
    x = jax.random.normal(kx, (B, C, H, W), jnp.float32)

    # 1) reference zero-init g: Rezero output must be exactly zero (parity at init).
    y0 = jax.block_until_ready(rezero_linear_attention(params, x))
    assert y0.shape == (B, C, H, W), y0.shape
    assert bool(jnp.all(y0 == 0.0)), "zero-init rezero gain must give an all-zero output"

    # 2) nonzero gain: validate the fused kernel against the pure-JAX f32 reference.
    params_nz = dict(params, g=jnp.full((1,), 0.5, jnp.float32))
    y = jax.block_until_ready(rezero_linear_attention(params_nz, x))
    y_ref = rezero_linear_attention_ref(params_nz, x)
    assert bool(jnp.all(jnp.isfinite(y)))
    err = float(jnp.max(jnp.abs(y - y_ref)))
    assert err < 5e-2, f"max abs err {err}"   # bf16 MXU inputs -> loose tolerance
    print("KERNEL_OK")
</pallas_src>

<mosaic_0001>
module attributes {stable_mosaic.version = 11 : i64} {
  func.func @_rezero_linattn_kernel(%arg0: i32, %arg1: memref<1x256x128xf32, #tpu.memory_space<vmem>>, %arg2: memref<128x384xbf16, #tpu.memory_space<vmem>>, %arg3: memref<128x128xbf16, #tpu.memory_space<vmem>>, %arg4: memref<1x128xf32, #tpu.memory_space<vmem>>, %arg5: memref<128x128xf32, #tpu.memory_space<vmem>>, %arg6: memref<1x1xf32, #tpu.memory_space<vmem>>, %arg7: memref<1x256x128xf32, #tpu.memory_space<vmem>>) attributes {dimension_semantics = [#tpu.dimension_semantics<parallel>], iteration_bounds = array<i64: 2>, scalar_prefetch = 0 : i64, scratch_operands = 0 : i64, tpu.core_type = #tpu.core_type<tc>, window_params = [{transform_indices = @transform_0, window_bounds = array<i64: 1, 256, 128>}, {pipeline_mode = #tpu.pipeline_mode<synchronous>, transform_indices = @transform_1, window_bounds = array<i64: 128, 384>}, {pipeline_mode = #tpu.pipeline_mode<synchronous>, transform_indices = @transform_2, window_bounds = array<i64: 128, 128>}, {pipeline_mode = #tpu.pipeline_mode<synchronous>, transform_indices = @transform_3, window_bounds = array<i64: 1, 128>}, {pipeline_mode = #tpu.pipeline_mode<synchronous>, transform_indices = @transform_4, window_bounds = array<i64: 128, 128>}, {pipeline_mode = #tpu.pipeline_mode<synchronous>, transform_indices = @transform_5, window_bounds = array<i64: 1, 1>}, {transform_indices = @transform_6, window_bounds = array<i64: 1, 256, 128>}]} {
    %c0 = arith.constant 0 : index
    %c0_0 = arith.constant 0 : index
    %c0_1 = arith.constant 0 : index
    %0 = vector.load %arg1[%c0, %c0_0, %c0_1] : memref<1x256x128xf32, #tpu.memory_space<vmem>>, vector<1x256x128xf32>
    %1 = vector.shape_cast %0 : vector<1x256x128xf32> to vector<256x128xf32>
    %2 = arith.truncf %1 : vector<256x128xf32> to vector<256x128xbf16>
    %c0_2 = arith.constant 0 : index
    %c0_3 = arith.constant 0 : index
    %3 = vector.load %arg2[%c0_2, %c0_3] : memref<128x384xbf16, #tpu.memory_space<vmem>>, vector<128x384xbf16>
    %cst = arith.constant dense<0.000000e+00> : vector<256x384xf32>
    %4 = tpu.matmul %2, %3, %cst {dimension_numbers = #tpu.dot_dimension_numbers<[1], [0], [0], [1], [0, 0, 1, 1], [], []>} : vector<256x128xbf16>, vector<128x384xbf16>, vector<256x384xf32> -> vector<256x384xf32>
    %5 = vector.extract_strided_slice %4 {offsets = [0, 0], sizes = [256, 128], strides = [1, 1]} : vector<256x384xf32> to vector<256x128xf32>
    %6 = vector.extract_strided_slice %4 {offsets = [0, 128], sizes = [256, 128], strides = [1, 1]} : vector<256x384xf32> to vector<256x128xf32>
    %7 = vector.extract_strided_slice %4 {offsets = [0, 256], sizes = [256, 128], strides = [1, 1]} : vector<256x384xf32> to vector<256x128xf32>
    %cst_4 = arith.constant dense<0xFF800000> : vector<128xf32>
    %8 = vector.multi_reduction <maximumf>, %6, %cst_4 [0] : vector<256x128xf32> to vector<128xf32>
    %9 = vector.shape_cast %8 : vector<128xf32> to vector<1x128xf32>
    %10 = vector.broadcast %9 : vector<1x128xf32> to vector<256x128xf32>
    %11 = arith.subf %6, %10 : vector<256x128xf32>
    %12 = math.exp %11 : vector<256x128xf32>
    %cst_5 = arith.constant dense<0.000000e+00> : vector<128xf32>
    %13 = vector.multi_reduction <add>, %12, %cst_5 [0] : vector<256x128xf32> to vector<128xf32>
    %14 = vector.shape_cast %13 : vector<128xf32> to vector<1x128xf32>
    %15 = tpu.reciprocal %14 {approx = true} : vector<1x128xf32> -> vector<1x128xf32>
    %16 = vector.broadcast %15 : vector<1x128xf32> to vector<256x128xf32>
    %17 = arith.mulf %12, %16 : vector<256x128xf32>
    %18 = arith.truncf %17 : vector<256x128xf32> to vector<256x128xbf16>
    %19 = arith.truncf %7 : vector<256x128xf32> to vector<256x128xbf16>
    %cst_6 = arith.constant dense<0.000000e+00> : vector<128x128xf32>
    %20 = tpu.matmul %18, %19, %cst_6 {dimension_numbers = #tpu.dot_dimension_numbers<[0], [0], [1], [1], [0, 1, 1, 1], [], []>} : vector<256x128xbf16>, vector<256x128xbf16>, vector<128x128xf32> -> vector<128x128xf32>
    %c0_7 = arith.constant 0 : index
    %c0_8 = arith.constant 0 : index
    %21 = vector.load %arg5[%c0_7, %c0_8] : memref<128x128xf32, #tpu.memory_space<vmem>>, vector<128x128xf32>
    %22 = arith.mulf %20, %21 : vector<128x128xf32>
    %23 = arith.truncf %5 : vector<256x128xf32> to vector<256x128xbf16>
    %24 = arith.truncf %22 : vector<128x128xf32> to vector<128x128xbf16>
    %cst_9 = arith.constant dense<0.000000e+00> : vector<256x128xf32>
    %25 = tpu.matmul %23, %24, %cst_9 {dimension_numbers = #tpu.dot_dimension_numbers<[1], [0], [0], [1], [0, 0, 1, 1], [], []>} : vector<256x128xbf16>, vector<128x128xbf16>, vector<256x128xf32> -> vector<256x128xf32>
    %26 = arith.truncf %25 : vector<256x128xf32> to vector<256x128xbf16>
    %c0_10 = arith.constant 0 : index
    %c0_11 = arith.constant 0 : index
    %27 = vector.load %arg3[%c0_10, %c0_11] : memref<128x128xbf16, #tpu.memory_space<vmem>>, vector<128x128xbf16>
    %cst_12 = arith.constant dense<0.000000e+00> : vector<256x128xf32>
    %28 = tpu.matmul %26, %27, %cst_12 {dimension_numbers = #tpu.dot_dimension_numbers<[1], [0], [0], [1], [0, 0, 1, 1], [], []>} : vector<256x128xbf16>, vector<128x128xbf16>, vector<256x128xf32> -> vector<256x128xf32>
    %c0_13 = arith.constant 0 : index
    %c0_14 = arith.constant 0 : index
    %29 = vector.load %arg4[%c0_13, %c0_14] : memref<1x128xf32, #tpu.memory_space<vmem>>, vector<1x128xf32>
    %30 = vector.broadcast %29 : vector<1x128xf32> to vector<256x128xf32>
    %31 = arith.addf %28, %30 : vector<256x128xf32>
    %c0_15 = arith.constant 0 : index
    %c0_16 = arith.constant 0 : index
    %32 = vector.load %arg6[%c0_15, %c0_16] : memref<1x1xf32, #tpu.memory_space<vmem>>, vector<1x1xf32>
    %33 = vector.broadcast %32 : vector<1x1xf32> to vector<256x128xf32>
    %34 = arith.mulf %31, %33 : vector<256x128xf32>
    %35 = vector.shape_cast %34 : vector<256x128xf32> to vector<1x256x128xf32>
    %c0_17 = arith.constant 0 : index
    %c0_18 = arith.constant 0 : index
    %c0_19 = arith.constant 0 : index
    %36 = vector.load %arg7[%c0_17, %c0_18, %c0_19] : memref<1x256x128xf32, #tpu.memory_space<vmem>>, vector<1x256x128xf32>
    tpu.vector_store %arg7[%c0_17, %c0_18, %c0_19], %35 {strides = array<i32>} : memref<1x256x128xf32, #tpu.memory_space<vmem>>, vector<1x256x128xf32>,
    return
  }
  func.func @transform_0(%arg0: i32) -> (i32, i32, i32) {
    %c0_i32 = arith.constant 0 : i32
    %c0_i32_0 = arith.constant 0 : i32
    %c0_i32_1 = arith.constant 0 : i32
    return %arg0, %c0_i32, %c0_i32_0 : i32, i32, i32
  }
  func.func @transform_1(%arg0: i32) -> (i32, i32) {
    %c0_i32 = arith.constant 0 : i32
    %c0_i32_0 = arith.constant 0 : i32
    %c0_i32_1 = arith.constant 0 : i32
    return %c0_i32, %c0_i32_0 : i32, i32
  }
  func.func @transform_2(%arg0: i32) -> (i32, i32) {
    %c0_i32 = arith.constant 0 : i32
    %c0_i32_0 = arith.constant 0 : i32
    %c0_i32_1 = arith.constant 0 : i32
    return %c0_i32, %c0_i32_0 : i32, i32
  }
  func.func @transform_3(%arg0: i32) -> (i32, i32) {
    %c0_i32 = arith.constant 0 : i32
    %c0_i32_0 = arith.constant 0 : i32
    %c0_i32_1 = arith.constant 0 : i32
    return %c0_i32, %c0_i32_0 : i32, i32
  }
  func.func @transform_4(%arg0: i32) -> (i32, i32) {
    %c0_i32 = arith.constant 0 : i32
    %c0_i32_0 = arith.constant 0 : i32
    %c0_i32_1 = arith.constant 0 : i32
    return %c0_i32, %c0_i32_0 : i32, i32
  }
  func.func @transform_5(%arg0: i32) -> (i32, i32) {
    %c0_i32 = arith.constant 0 : i32
    %c0_i32_0 = arith.constant 0 : i32
    %c0_i32_1 = arith.constant 0 : i32
    return %c0_i32, %c0_i32_0 : i32, i32
  }
  func.func @transform_6(%arg0: i32) -> (i32, i32, i32) {
    %c0_i32 = arith.constant 0 : i32
    %c0_i32_0 = arith.constant 0 : i32
    %c0_i32_1 = arith.constant 0 : i32
    return %arg0, %c0_i32, %c0_i32_0 : i32, i32, i32
  }
}

</mosaic_0001>

<llo_original>
// kernel: tpu_custom_call.1
$region0: #{tpu_custom_call.1}
  #allocation0 [shape = 'u32[]', space=smem, size = 0x4, offset = 0x4, fixed_abs, tag = 'smem constant byte address 0x4 - core index']
  #allocation1 [shape = 'u32[144,128]{1,0:T(1,128)}', space=vmem, size = 0x12000, scoped, tag = 'internal scratch']
  #allocation2 [shape = 'f32[1,1]{1,0:T(1,128)S(1)}', space=vmem, size = 0x200, scoped, tag = 'scoped memory for tpu_custom_call.1']
  %s0 = inlined_call_operand.hbm [shape: f32[2,256,128], index: 0, kind: input, shape index: {}]
  %s1 = inlined_call_operand.hbm [shape: bf16[128,384], index: 1, kind: input, shape index: {}]
  %s2 = inlined_call_operand.hbm [shape: bf16[128,128], index: 2, kind: input, shape index: {}]
  %s3 = inlined_call_operand.vmem [shape: f32[1,128], index: 3, kind: input, shape index: {}]
  %s4 = inlined_call_operand.hbm [shape: f32[128,128], index: 4, kind: input, shape index: {}]
  %s5 = inlined_call_operand.<no memory space> [shape: f32[1,1], index: 5, kind: input, shape index: {}]
  %s6 = inlined_call_operand.hbm [shape: f32[2,256,128], index: 6, kind: output, shape index: {}]
  %s7 = sld [smem:[#allocation0]]
  $region73: #{tpu_custom_call.1} parent=0
    _
  %s9 = ssub.s32 1, %s7
  %s10 = scalar_select 0, %s9, %s7
  %v11 = vstv %s5
  %12 = vst [vmem:[#allocation2] sm:$0x1] %v11
  $region1: #{tpu_custom_call.1} parent=0
    #allocation3 [shape = 'u8[262144]{0}', space=vmem, size = 0x40000, scoped, tag = 'input window, operand 0']
    #allocation4 [shape = 's32[2]{0}', space=sflag, size = 0x8, scoped, tag = 'scoped memory for tpu_custom_call.1']
    #allocation5 [shape = 's32[2]{0}', space=sflag, size = 0x8, scoped, tag = 'scoped memory for tpu_custom_call.1']
    #allocation6 [shape = 'u8[98304]{0}', space=vmem, size = 0x18000, scoped, tag = 'input window, operand 1, single buffered']
    #allocation7 [shape = 's32[1]{0}', space=sflag, size = 0x4, scoped, tag = 'scoped memory for tpu_custom_call.1']
    #allocation8 [shape = 'u8[32768]{0}', space=vmem, size = 0x8000, scoped, tag = 'input window, operand 2, single buffered']
    #allocation9 [shape = 'u8[65536]{0}', space=vmem, size = 0x10000, scoped, tag = 'input window, operand 4, single buffered']
    #allocation10 [shape = 's32[1]{0}', space=sflag, size = 0x4, scoped, tag = 'scoped memory for tpu_custom_call.1']
    #allocation11 [shape = 'u8[262144]{0}', space=vmem, size = 0x40000, scoped, tag = 'output window, operand 0']
    %13 = vsyncpa [#allocation4], 0
    %s14 = scalar_lea.sflag [#allocation4], 1
    %15 = vsyncpa %s14, 0
    %16 = vsyncpa [#allocation7], 0
    %17 = vsyncpa [#allocation10], 0
    %18 = vsyncpa [#allocation5], 0
    %s19 = scalar_lea.sflag [#allocation5], 1
    %20 = vsyncpa %s19, 0
    loop: start=0, step=1, limit=4
    $region2: #{tpu_custom_call.1} parent=1 // loop_pre_header
      _
    $region3: #{tpu_custom_call.1} parent=1 // loop_header
      %s22 = sphi 0, %s26
      %p23 = scmp.ge.s32.totalorder %s22, 4
      %s32 = sphi 0, %s34
      %s35 = sphi 0, %s32
      %s36 = sphi 0, %s35
      %s52 = sphi 0, %s36
      %s56 = sphi 0, %s56
      %s58 = sphi 0, %s56
      %s59 = sphi 0, %s58
      %s73 = sphi 0, %s59
      %s77 = sphi 0, %s77
      %s79 = sphi 0, %s77
      %s80 = sphi 0, %s79
      %s94 = sphi 0, %s80
      %s98 = sphi 0, %s98
      %s100 = sphi 0, %s98
      %s101 = sphi 0, %s100
      %s115 = sphi 0, %s101
      %s119 = sphi 0, %s119
      %s121 = sphi 0, %s119
      %s122 = sphi 0, %s121
      %s136 = sphi 0, %s122
      %s140 = sphi 0, %s140
      %s142 = sphi 0, %s140
      %s143 = sphi 0, %s142
      %s157 = sphi 0, %s143
      %s163 = sphi 0, %s165
      %s166 = sphi 0, %s163
      %s167 = sphi 0, %s166
      %s183 = sphi 0, %s167
    $region4: #{tpu_custom_call.1} parent=1 // loop_header_branch
      %25 = sbr.rel (%p23) target = $region8
    $region5: #{tpu_custom_call.1} parent=1 // loop_body
      %s27 = ssub.s32 %s22, 1
      %s28 = ssub.s32 %s22, 2
      %s29 = sadd.s32 %s22, 1
      %s30 = ssub.s32 %s22, %s29
      %p31 = scmp.eq.s32.totalorder %s30, 0
      %s33 = sadd.s32 %s32, 1
      %s34 = scalar_select %p31, %s32, %s33
      %p37 = pneg %p31
      %p38 = scmp.eq.s32.totalorder %s22, 1
      %p39 = por %p37, %p38
      %p40 = scmp.ne.s32.totalorder %s32, %s35
      %p41 = scmp.eq.s32.totalorder %s22, 0
      %p42 = por %p40, %p41
      %p43 = scmp.ne.s32.totalorder %s32, %s35
      %p44 = scmp.eq.s32.totalorder %s27, 1
      %p45 = por %p43, %p44
      %p46 = scmp.ne.s32.totalorder %s35, %s36
      %p47 = scmp.eq.s32.totalorder %s27, 0
      %p48 = por %p46, %p47
      %p49 = scmp.ne.s32.totalorder %s35, %s36
      %p50 = scmp.eq.s32.totalorder %s28, 1
      %p51 = por %p49, %p50
      %p53 = scmp.ne.s32.totalorder %s36, %s52
      %p54 = scmp.eq.s32.totalorder %s28, 0
      %p55 = por %p53, %p54
      %s57 = sadd.s32 %s56, 1
      %p60 = scmp.eq.s32.totalorder %s22, 1
      %p61 = scmp.ne.s32.totalorder %s56, %s58
      %p62 = scmp.eq.s32.totalorder %s22, 0
      %p63 = por %p61, %p62
      %p64 = scmp.ne.s32.totalorder %s56, %s58
      %p65 = scmp.eq.s32.totalorder %s27, 1
      %p66 = por %p64, %p65
      %p67 = scmp.ne.s32.totalorder %s58, %s59
      %p68 = scmp.eq.s32.totalorder %s27, 0
      %p69 = por %p67, %p68
      %p70 = scmp.ne.s32.totalorder %s58, %s59
      %p71 = scmp.eq.s32.totalorder %s28, 1
      %p72 = por %p70, %p71
      %p74 = scmp.ne.s32.totalorder %s59, %s73
      %p75 = scmp.eq.s32.totalorder %s28, 0
      %p76 = por %p74, %p75
      %s78 = sadd.s32 %s77, 1
      %p81 = scmp.eq.s32.totalorder %s22, 1
      %p82 = scmp.ne.s32.totalorder %s77, %s79
      %p83 = scmp.eq.s32.totalorder %s22, 0
      %p84 = por %p82, %p83
      %p85 = scmp.ne.s32.totalorder %s77, %s79
      %p86 = scmp.eq.s32.totalorder %s27, 1
      %p87 = por %p85, %p86
      %p88 = scmp.ne.s32.totalorder %s79, %s80
      %p89 = scmp.eq.s32.totalorder %s27, 0
      %p90 = por %p88, %p89
      %p91 = scmp.ne.s32.totalorder %s79, %s80
      %p92 = scmp.eq.s32.totalorder %s28, 1
      %p93 = por %p91, %p92
      %p95 = scmp.ne.s32.totalorder %s80, %s94
      %p96 = scmp.eq.s32.totalorder %s28, 0
      %p97 = por %p95, %p96
      %s99 = sadd.s32 %s98, 1
      %p102 = scmp.eq.s32.totalorder %s22, 1
      %p103 = scmp.ne.s32.totalorder %s98, %s100
      %p104 = scmp.eq.s32.totalorder %s22, 0
      %p105 = por %p103, %p104
      %p106 = scmp.ne.s32.totalorder %s98, %s100
      %p107 = scmp.eq.s32.totalorder %s27, 1
      %p108 = por %p106, %p107
      %p109 = scmp.ne.s32.totalorder %s100, %s101
      %p110 = scmp.eq.s32.totalorder %s27, 0
      %p111 = por %p109, %p110
      %p112 = scmp.ne.s32.totalorder %s100, %s101
      %p113 = scmp.eq.s32.totalorder %s28, 1
      %p114 = por %p112, %p113
      %p116 = scmp.ne.s32.totalorder %s101, %s115
      %p117 = scmp.eq.s32.totalorder %s28, 0
      %p118 = por %p116, %p117
      %s120 = sadd.s32 %s119, 1
      %p123 = scmp.eq.s32.totalorder %s22, 1
      %p124 = scmp.ne.s32.totalorder %s119, %s121
      %p125 = scmp.eq.s32.totalorder %s22, 0
      %p126 = por %p124, %p125
      %p127 = scmp.ne.s32.totalorder %s119, %s121
      %p128 = scmp.eq.s32.totalorder %s27, 1
      %p129 = por %p127, %p128
      %p130 = scmp.ne.s32.totalorder %s121, %s122
      %p131 = scmp.eq.s32.totalorder %s27, 0
      %p132 = por %p130, %p131
      %p133 = scmp.ne.s32.totalorder %s121, %s122
      %p134 = scmp.eq.s32.totalorder %s28, 1
      %p135 = por %p133, %p134
      %p137 = scmp.ne.s32.totalorder %s122, %s136
      %p138 = scmp.eq.s32.totalorder %s28, 0
      %p139 = por %p137, %p138
      %s141 = sadd.s32 %s140, 1
      %p144 = scmp.eq.s32.totalorder %s22, 1
      %p145 = scmp.ne.s32.totalorder %s140, %s142
      %p146 = scmp.eq.s32.totalorder %s22, 0
      %p147 = por %p145, %p146
      %p148 = scmp.ne.s32.totalorder %s140, %s142
      %p149 = scmp.eq.s32.totalorder %s27, 1
      %p150 = por %p148, %p149
      %p151 = scmp.ne.s32.totalorder %s142, %s143
      %p152 = scmp.eq.s32.totalorder %s27, 0
      %p153 = por %p151, %p152
      %p154 = scmp.ne.s32.totalorder %s142, %s143
      %p155 = scmp.eq.s32.totalorder %s28, 1
      %p156 = por %p154, %p155
      %p158 = scmp.ne.s32.totalorder %s143, %s157
      %p159 = scmp.eq.s32.totalorder %s28, 0
      %p160 = por %p158, %p159
      %s161 = ssub.s32 %s22, %s29
      %p162 = scmp.eq.s32.totalorder %s161, 0
      %s164 = sadd.s32 %s163, 1
      %s165 = scalar_select %p162, %s163, %s164
      %p168 = pneg %p162
      %p169 = scmp.eq.s32.totalorder %s22, 1
      %p170 = por %p168, %p169
      %p171 = scmp.ne.s32.totalorder %s163, %s166
      %p172 = scmp.eq.s32.totalorder %s22, 0
      %p173 = por %p171, %p172
      %p174 = scmp.ne.s32.totalorder %s163, %s166
      %p175 = scmp.eq.s32.totalorder %s27, 1
      %p176 = por %p174, %p175
      %p177 = scmp.ne.s32.totalorder %s166, %s167
      %p178 = scmp.eq.s32.totalorder %s27, 0
      %p179 = por %p177, %p178
      %p180 = scmp.ne.s32.totalorder %s166, %s167
      %p181 = scmp.eq.s32.totalorder %s28, 1
      %p182 = por %p180, %p181
      %p184 = scmp.ne.s32.totalorder %s167, %s183
      %p185 = scmp.eq.s32.totalorder %s28, 0
      %p186 = por %p184, %p185
      %p187 = scmp.le.s32.totalorder 1, %s22
      %p188 = scmp.lt.s32.totalorder %s22, 3
      %p189 = pnand %p187, %p188
      %p190 = pneg %p189
      // Predicated region
      $region9: #{tpu_custom_call.1} parent=5 // pred_check
        _
      $region10: #{tpu_custom_call.1} parent=5 // pred_check_branch
        %192 = sbr.rel (%p189) target = $region12
      $region11: #{tpu_custom_call.1} parent=5 // pred_region
        %s193 = ssub.s32 %s22, 1
        // Predicated region
        $region13: #{tpu_custom_call.1} parent=11 // pred_check
          %p194 = pneg %p69
        $region14: #{tpu_custom_call.1} parent=11 // pred_check_branch
          %196 = sbr.rel (%p194) target = $region16
        $region15: #{tpu_custom_call.1} parent=11 // pred_region
          %s198 = ssub.s32 3072, 3072
          %199 = vsyncadd [#allocation7], %s198
          %s200 = sshll.u32 [#allocation6], 4
          %s201 = int_to_ptr.vmem [resolvable:$true] %s200
          %206 = dma.hbm_to_vmem [thread:$0]  %s1, 3072, %s201, [#allocation7], 192, 192, 12
        $region16: #{tpu_custom_call.1} parent=11 // pred_fallthru
          _
        // Predicated region
        $region17: #{tpu_custom_call.1} parent=11 // pred_check
          %p207 = pneg %p90
        $region18: #{tpu_custom_call.1} parent=11 // pred_check_branch
          %209 = sbr.rel (%p207) target = $region20
        $region19: #{tpu_custom_call.1} parent=11 // pred_region
          %s211 = ssub.s32 1024, 1024
          %212 = vsyncadd [#allocation7], %s211
          %s213 = sshll.u32 [#allocation8], 4
          %s214 = int_to_ptr.vmem [resolvable:$true] %s213
          %219 = dma.hbm_to_vmem [thread:$0]  %s2, 1024, %s214, [#allocation7], 64, 64, 4
        $region20: #{tpu_custom_call.1} parent=11 // pred_fallthru
          _
        // Predicated region
        $region21: #{tpu_custom_call.1} parent=11 // pred_check
          %p220 = pneg %p111
        $region22: #{tpu_custom_call.1} parent=11 // pred_check_branch
          %222 = sbr.rel (%p220) target = $region24
        $region23: #{tpu_custom_call.1} parent=11 // pred_region
          _
        $region24: #{tpu_custom_call.1} parent=11 // pred_fallthru
          _
        // Predicated region
        $region25: #{tpu_custom_call.1} parent=11 // pred_check
          %p223 = pneg %p132
        $region26: #{tpu_custom_call.1} parent=11 // pred_check_branch
          %225 = sbr.rel (%p223) target = $region28
        $region27: #{tpu_custom_call.1} parent=11 // pred_region
          %s227 = ssub.s32 2048, 2048
          %228 = vsyncadd [#allocation10], %s227
          %s229 = sshll.u32 [#allocation9], 4
          %s230 = int_to_ptr.vmem [resolvable:$true] %s229
          %235 = dma.hbm_to_vmem [thread:$0]  %s4, 2048, %s230, [#allocation10], 128, 128, 8
        $region28: #{tpu_custom_call.1} parent=11 // pred_fallthru
          _
        // Predicated region
        $region29: #{tpu_custom_call.1} parent=11 // pred_check
          %p236 = pneg %p153
        $region30: #{tpu_custom_call.1} parent=11 // pred_check_branch
          %238 = sbr.rel (%p236) target = $region32
        $region31: #{tpu_custom_call.1} parent=11 // pred_region
          _
        $region32: #{tpu_custom_call.1} parent=11 // pred_fallthru
          _
      $region12: #{tpu_custom_call.1} parent=5 // pred_fallthru
        _
      %p239 = scmp.lt.s32.totalorder %s22, 2
      // Predicated region
      $region33: #{tpu_custom_call.1} parent=5 // pred_check
        %p240 = pneg %p239
      $region34: #{tpu_custom_call.1} parent=5 // pred_check_branch
        %242 = sbr.rel (%p240) target = $region36
      $region35: #{tpu_custom_call.1} parent=5 // pred_region
        // Predicated region
        $region37: #{tpu_custom_call.1} parent=35 // pred_check
          %p243 = pneg %p42
        $region38: #{tpu_custom_call.1} parent=35 // pred_check_branch
          %245 = sbr.rel (%p243) target = $region40
        $region39: #{tpu_custom_call.1} parent=35 // pred_region
          %s246 = sand.u32 %s32, 1
          %s247 = scalar_lea.sflag [#allocation4], %s246
          %s248 = sand.u32 %s32, 1
          %s249 = smul.addr %s248, 256
          %s250 = scalar_lea.vmem [#allocation3], %s249
          %s252 = ssub.s32 4096, 4096
          %253 = vsyncadd %s247, %s252
          %s254 = smul.addr %s22, 32
          %s255 = smul.addr %s254, 128
          %s256 = scalar_lea.hbm %s0, %s255
          %s257 = sshll.u32 %s250, 4
          %s258 = int_to_ptr.vmem [resolvable:$true] %s257
          %263 = dma.hbm_to_vmem [thread:$0]  %s256, 4096, %s258, %s247, 128, 128, 8
        $region40: #{tpu_custom_call.1} parent=35 // pred_fallthru
          _
      $region36: #{tpu_custom_call.1} parent=5 // pred_fallthru
        _
      %p264 = scmp.le.s32.totalorder 1, %s22
      %p265 = scmp.lt.s32.totalorder %s22, 3
      %p266 = pnand %p264, %p265
      %p267 = pneg %p266
      // Predicated region
      $region41: #{tpu_custom_call.1} parent=5 // pred_check
        _
      $region42: #{tpu_custom_call.1} parent=5 // pred_check_branch
        %269 = sbr.rel (%p266) target = $region44
      $region43: #{tpu_custom_call.1} parent=5 // pred_region
        %s270 = ssub.s32 %s22, 1
        %s271 = sand.u32 %s35, 1
        %s272 = scalar_lea.sflag [#allocation4], %s271
        %s273 = sand.u32 %s35, 1
        %s274 = smul.addr %s273, 256
        %s275 = scalar_lea.vmem [#allocation3], %s274
        // Predicated region
        $region45: #{tpu_custom_call.1} parent=43 // pred_check
          %p276 = pneg %p48
        $region46: #{tpu_custom_call.1} parent=43 // pred_check_branch
          %278 = sbr.rel (%p276) target = $region48
        $region47: #{tpu_custom_call.1} parent=43 // pred_region
          %279 = dma.done %s272, 4096
        $region48: #{tpu_custom_call.1} parent=43 // pred_fallthru
          _
        // Predicated region
        $region49: #{tpu_custom_call.1} parent=43 // pred_check
          %p280 = pneg %p69
        $region50: #{tpu_custom_call.1} parent=43 // pred_check_branch
          %282 = sbr.rel (%p280) target = $region52
        $region51: #{tpu_custom_call.1} parent=43 // pred_region
          %283 = dma.done [#allocation7], 3072
        $region52: #{tpu_custom_call.1} parent=43 // pred_fallthru
          _
        // Predicated region
        $region53: #{tpu_custom_call.1} parent=43 // pred_check
          %p284 = pneg %p90
        $region54: #{tpu_custom_call.1} parent=43 // pred_check_branch
          %286 = sbr.rel (%p284) target = $region56
        $region55: #{tpu_custom_call.1} parent=43 // pred_region
          %287 = dma.done [#allocation7], 1024
        $region56: #{tpu_custom_call.1} parent=43 // pred_fallthru
          _
        // Predicated region
        $region57: #{tpu_custom_call.1} parent=43 // pred_check
          %p288 = pneg %p132
        $region58: #{tpu_custom_call.1} parent=43 // pred_check_branch
          %290 = sbr.rel (%p288) target = $region60
        $region59: #{tpu_custom_call.1} parent=43 // pred_region
          %291 = dma.done [#allocation10], 2048
        $region60: #{tpu_custom_call.1} parent=43 // pred_fallthru
          _
        %s292 = sand.u32 %s35, 1
        %s293 = scalar_lea.sflag [#allocation4], %s292
        %s294 = sand.u32 %s35, 1
        %s295 = smul.addr %s294, 256
        %s296 = scalar_lea.vmem [#allocation3], %s295
        %p297 = pneg %p48
        %p298 = pneg %p45
        %p299 = pneg %p69
        %p300 = pneg %p66
        %p301 = pneg %p90
        %p302 = pneg %p87
        %p303 = pneg %p111
        %p304 = pneg %p108
        %p305 = pneg %p132
        %p306 = pneg %p129
        %p307 = pneg %p153
        %p308 = pneg %p150
        %p309 = pneg %p179
        %p310 = pneg %p176
        %s311 = sand.u32 %s166, 1
        %s312 = scalar_lea.sflag [#allocation5], %s311
        %s313 = sand.u32 %s166, 1
        %s314 = smul.addr %s313, 256
        %s315 = scalar_lea.vmem [#allocation11], %s314
        %v317 = vld [vmem:[%s275] sm:$0xff]
        %v318 = vld [vmem:[%s275 + $0x8] sm:$0xff]
        %v319 = vld [vmem:[%s275 + $0x10] sm:$0xff]
        %v320 = vld [vmem:[%s275 + $0x18] sm:$0xff]
        %v321 = vld [vmem:[%s275 + $0x20] sm:$0xff]
        %v322 = vld [vmem:[%s275 + $0x28] sm:$0xff]
        %v323 = vld [vmem:[%s275 + $0x30] sm:$0xff]
        %v324 = vld [vmem:[%s275 + $0x38] sm:$0xff]
        %v325 = vld [vmem:[%s275 + $0x40] sm:$0xff]
        %v326 = vld [vmem:[%s275 + $0x48] sm:$0xff]
        %v327 = vld [vmem:[%s275 + $0x50] sm:$0xff]
        %v328 = vld [vmem:[%s275 + $0x58] sm:$0xff]
        %v329 = vld [vmem:[%s275 + $0x60] sm:$0xff]
        %v330 = vld [vmem:[%s275 + $0x68] sm:$0xff]
        %v331 = vld [vmem:[%s275 + $0x70] sm:$0xff]
        %v332 = vld [vmem:[%s275 + $0x78] sm:$0xff]
        %v333 = vld [vmem:[%s275 + $0x80] sm:$0xff]
        %v334 = vld [vmem:[%s275 + $0x88] sm:$0xff]
        %v335 = vld [vmem:[%s275 + $0x90] sm:$0xff]
        %v336 = vld [vmem:[%s275 + $0x98] sm:$0xff]
        %v337 = vld [vmem:[%s275 + $0xa0] sm:$0xff]
        %v338 = vld [vmem:[%s275 + $0xa8] sm:$0xff]
        %v339 = vld [vmem:[%s275 + $0xb0] sm:$0xff]
        %v340 = vld [vmem:[%s275 + $0xb8] sm:$0xff]
        %v341 = vld [vmem:[%s275 + $0xc0] sm:$0xff]
        %v342 = vld [vmem:[%s275 + $0xc8] sm:$0xff]
        %v343 = vld [vmem:[%s275 + $0xd0] sm:$0xff]
        %v344 = vld [vmem:[%s275 + $0xd8] sm:$0xff]
        %v345 = vld [vmem:[%s275 + $0xe0] sm:$0xff]
        %v346 = vld [vmem:[%s275 + $0xe8] sm:$0xff]
        %v347 = vld [vmem:[%s275 + $0xf0] sm:$0xff]
        %v348 = vld [vmem:[%s275 + $0xf8] sm:$0xff]
        %v349 = vpack.c.bf16 %v318, %v317
        %v350 = vpack.c.bf16 %v320, %v319
        %v351 = vpack.c.bf16 %v322, %v321
        %v352 = vpack.c.bf16 %v324, %v323
        %v353 = vpack.c.bf16 %v326, %v325
        %v354 = vpack.c.bf16 %v328, %v327
        %v355 = vpack.c.bf16 %v330, %v329
        %v356 = vpack.c.bf16 %v332, %v331
        %v357 = vpack.c.bf16 %v334, %v333
        %v358 = vpack.c.bf16 %v336, %v335
        %v359 = vpack.c.bf16 %v338, %v337
        %v360 = vpack.c.bf16 %v340, %v339
        %v361 = vpack.c.bf16 %v342, %v341
        %v362 = vpack.c.bf16 %v344, %v343
        %v363 = vpack.c.bf16 %v346, %v345
        %v364 = vpack.c.bf16 %v348, %v347
        %v365 = vld [vmem:[#allocation6] sm:$0xff]
        %v366 = vld [vmem:[#allocation6 + $0x8] sm:$0xf]
        %v367 = vld [vmem:[#allocation6 + $0xc] sm:$0xff]
        %v368 = vld [vmem:[#allocation6 + $0x14] sm:$0xf]
        %v369 = vld [vmem:[#allocation6 + $0x18] sm:$0xff]
        %v370 = vld [vmem:[#allocation6 + $0x20] sm:$0xf]
        %v371 = vld [vmem:[#allocation6 + $0x24] sm:$0xff]
        %v372 = vld [vmem:[#allocation6 + $0x2c] sm:$0xf]
        %v373 = vld [vmem:[#allocation6 + $0x30] sm:$0xff]
        %v374 = vld [vmem:[#allocation6 + $0x38] sm:$0xf]
        %v375 = vld [vmem:[#allocation6 + $0x3c] sm:$0xff]
        %v376 = vld [vmem:[#allocation6 + $0x44] sm:$0xf]
        %v377 = vld [vmem:[#allocation6 + $0x48] sm:$0xff]
        %v378 = vld [vmem:[#allocation6 + $0x50] sm:$0xf]
        %v379 = vld [vmem:[#allocation6 + $0x54] sm:$0xff]
        %v380 = vld [vmem:[#allocation6 + $0x5c] sm:$0xf]
        %v381 = vld [vmem:[#allocation6 + $0x60] sm:$0xff]
        %v382 = vld [vmem:[#allocation6 + $0x68] sm:$0xf]
        %v383 = vld [vmem:[#allocation6 + $0x6c] sm:$0xff]
        %v384 = vld [vmem:[#allocation6 + $0x74] sm:$0xf]
        %v385 = vld [vmem:[#allocation6 + $0x78] sm:$0xff]
        %v386 = vld [vmem:[#allocation6 + $0x80] sm:$0xf]
        %v387 = vld [vmem:[#allocation6 + $0x84] sm:$0xff]
        %v388 = vld [vmem:[#allocation6 + $0x8c] sm:$0xf]
        %v389 = vld [vmem:[#allocation6 + $0x90] sm:$0xff]
        %v390 = vld [vmem:[#allocation6 + $0x98] sm:$0xf]
        %v391 = vld [vmem:[#allocation6 + $0x9c] sm:$0xff]
        %v392 = vld [vmem:[#allocation6 + $0xa4] sm:$0xf]
        %v393 = vld [vmem:[#allocation6 + $0xa8] sm:$0xff]
        %v394 = vld [vmem:[#allocation6 + $0xb0] sm:$0xf]
        %v395 = vld [vmem:[#allocation6 + $0xb4] sm:$0xff]
        %v396 = vld [vmem:[#allocation6 + $0xbc] sm:$0xf]
        %v429 = vunpack.c.l.b16 %v365
        %v430 = vunpack.c.h.b16 %v365
        %v431 = vunpack.c.l.b16 %v366
        %v432 = vunpack.c.l.b16 %v367
        %v433 = vunpack.c.h.b16 %v367
        %v434 = vunpack.c.l.b16 %v368
        %v435 = vunpack.c.l.b16 %v369
        %v436 = vunpack.c.h.b16 %v369
        %v437 = vunpack.c.l.b16 %v370
        %v438 = vunpack.c.l.b16 %v371
        %v439 = vunpack.c.h.b16 %v371
        %v440 = vunpack.c.l.b16 %v372
        %v441 = vunpack.c.l.b16 %v373
        %v442 = vunpack.c.h.b16 %v373
        %v443 = vunpack.c.l.b16 %v374
        %v444 = vunpack.c.l.b16 %v375
        %v445 = vunpack.c.h.b16 %v375
        %v446 = vunpack.c.l.b16 %v376
        %v447 = vunpack.c.l.b16 %v377
        %v448 = vunpack.c.h.b16 %v377
        %v449 = vunpack.c.l.b16 %v378
        %v450 = vunpack.c.l.b16 %v379
        %v451 = vunpack.c.h.b16 %v379
        %v452 = vunpack.c.l.b16 %v380
        %v453 = vunpack.c.l.b16 %v381
        %v454 = vunpack.c.h.b16 %v381
        %v455 = vunpack.c.l.b16 %v382
        %v456 = vunpack.c.l.b16 %v383
        %v457 = vunpack.c.h.b16 %v383
        %v458 = vunpack.c.l.b16 %v384
        %v459 = vunpack.c.l.b16 %v385
        %v460 = vunpack.c.h.b16 %v385
        %v461 = vunpack.c.l.b16 %v386
        %v462 = vunpack.c.l.b16 %v387
        %v463 = vunpack.c.h.b16 %v387
        %v464 = vunpack.c.l.b16 %v388
        %v465 = vunpack.c.l.b16 %v389
        %v466 = vunpack.c.h.b16 %v389
        %v467 = vunpack.c.l.b16 %v390
        %v468 = vunpack.c.l.b16 %v391
        %v469 = vunpack.c.h.b16 %v391
        %v470 = vunpack.c.l.b16 %v392
        %v471 = vunpack.c.l.b16 %v393
        %v472 = vunpack.c.h.b16 %v393
        %v473 = vunpack.c.l.b16 %v394
        %v474 = vunpack.c.l.b16 %v395
        %v475 = vunpack.c.h.b16 %v395
        %v476 = vunpack.c.l.b16 %v396
        %v477 = vpack.c.b16 %v432, %v429
        %v478 = vpack.c.b16 %v433, %v430
        %v479 = vpack.c.b16 %v434, %v431
        %v480 = vpack.c.b16 %v438, %v435
        %v481 = vpack.c.b16 %v439, %v436
        %v482 = vpack.c.b16 %v440, %v437
        %v483 = vpack.c.b16 %v444, %v441
        %v484 = vpack.c.b16 %v445, %v442
        %v485 = vpack.c.b16 %v446, %v443
        %v486 = vpack.c.b16 %v450, %v447
        %v487 = vpack.c.b16 %v451, %v448
        %v488 = vpack.c.b16 %v452, %v449
        %v489 = vpack.c.b16 %v456, %v453
        %v490 = vpack.c.b16 %v457, %v454
        %v491 = vpack.c.b16 %v458, %v455
        %v492 = vpack.c.b16 %v462, %v459
        %v493 = vpack.c.b16 %v463, %v460
        %v494 = vpack.c.b16 %v464, %v461
        %v495 = vpack.c.b16 %v468, %v465
        %v496 = vpack.c.b16 %v469, %v466
        %v497 = vpack.c.b16 %v470, %v467
        %v498 = vpack.c.b16 %v474, %v471
        %v499 = vpack.c.b16 %v475, %v472
        %v500 = vpack.c.b16 %v476, %v473
        %525 = vmatprep.subr.bf16.mxu0 %v478
        %526 = vmatpush1.bf16.msra.mxu0 %v477
        %527 = vmatprep.subr.bf16.mxu0 %v481
        %528 = vmatpush1.bf16.msra.mxu0 %v480
        %529 = vmatprep.subr.bf16.mxu0 %v484
        %530 = vmatpush1.bf16.msra.mxu0 %v483
        %531 = vmatprep.subr.bf16.mxu0 %v487
        %532 = vmatpush1.bf16.msra.mxu0 %v486
        %533 = vmatprep.subr.bf16.mxu0 %v490
        %534 = vmatpush1.bf16.msra.mxu0 %v489
        %535 = vmatprep.subr.bf16.mxu0 %v493
        %536 = vmatpush1.bf16.msra.mxu0 %v492
        %537 = vmatprep.subr.bf16.mxu0 %v496
        %538 = vmatpush1.bf16.msra.mxu0 %v495
        %539 = vmatprep.subr.bf16.mxu0 %v499
        %540 = vmatpush1.bf16.msra.mxu0 %v498
        %541 = vmatprep.subr.bf16.mxu0 0
        %542 = vmatpush1.bf16.msra.mxu0 0
        %543 = vmatprep.subr.bf16.mxu0 0
        %544 = vmatpush1.bf16.msra.mxu0 0
        %545 = vmatprep.subr.bf16.mxu0 0
        %546 = vmatpush1.bf16.msra.mxu0 0
        %547 = vmatprep.subr.bf16.mxu0 0
        %548 = vmatpush1.bf16.msra.mxu0 0
        %549 = vmatprep.subr.bf16.mxu0 0
        %550 = vmatpush1.bf16.msra.mxu0 0
        %551 = vmatprep.subr.bf16.mxu0 0
        %552 = vmatpush1.bf16.msra.mxu0 0
        %553 = vmatprep.subr.bf16.mxu0 0
        %554 = vmatpush1.bf16.msra.mxu0 0
        %555 = vmatprep.subr.bf16.mxu0 0
        %556 = vmatpush1.bf16.msra.mxu0 0
        %557 = vmatprep.mubr.bf16.mxu0 0
        %558 = vmatmul.mubr.bf16.gmra.mrb[0].mxu0 %v349
        %v559 = vpop.f32.mrb[0].mxu0
        %v560 = vadd.f32 0.0, %v559
        %v561 = vpop.f32.mrb[0].mxu0
        %v562 = vadd.f32 0.0, %v561
        %v563 = vpop.f32.mrb[0].mxu0
        %v564 = vadd.f32 0.0, %v563
        %v565 = vpop.f32.mrb[0].mxu0
        %v566 = vadd.f32 0.0, %v565
        %567 = vmatprep.mubr.bf16.mxu0 0
        %568 = vmatmul.mubr.bf16.gmra.mrb[0].mxu0 %v350
        %v569 = vpop.f32.mrb[0].mxu0
        %v570 = vadd.f32 0.0, %v569
        %v571 = vpop.f32.mrb[0].mxu0
        %v572 = vadd.f32 0.0, %v571
        %v573 = vpop.f32.mrb[0].mxu0
        %v574 = vadd.f32 0.0, %v573
        %v575 = vpop.f32.mrb[0].mxu0
        %v576 = vadd.f32 0.0, %v575
        %577 = vmatprep.mubr.bf16.mxu0 0
        %578 = vmatmul.mubr.bf16.gmra.mrb[0].mxu0 %v351
        %v579 = vpop.f32.mrb[0].mxu0
        %v580 = vadd.f32 0.0, %v579
        %v581 = vpop.f32.mrb[0].mxu0
        %v582 = vadd.f32 0.0, %v581
        %v583 = vpop.f32.mrb[0].mxu0
        %v584 = vadd.f32 0.0, %v583
        %v585 = vpop.f32.mrb[0].mxu0
        %v586 = vadd.f32 0.0, %v585
        %587 = vmatprep.mubr.bf16.mxu0 0
        %588 = vmatmul.mubr.bf16.gmra.mrb[0].mxu0 %v352
        %v589 = vpop.f32.mrb[0].mxu0
        %v590 = vadd.f32 0.0, %v589
        %v591 = vpop.f32.mrb[0].mxu0
        %v592 = vadd.f32 0.0, %v591
        %v593 = vpop.f32.mrb[0].mxu0
        %v594 = vadd.f32 0.0, %v593
        %v595 = vpop.f32.mrb[0].mxu0
        %v596 = vadd.f32 0.0, %v595
        %597 = vmatprep.mubr.bf16.mxu0 0
        %598 = vmatmul.mubr.bf16.gmra.mrb[0].mxu0 %v353
        %v599 = vpop.f32.mrb[0].mxu0
        %v600 = vadd.f32 0.0, %v599
        %v601 = vpop.f32.mrb[0].mxu0
        %v602 = vadd.f32 0.0, %v601
        %v603 = vpop.f32.mrb[0].mxu0
        %v604 = vadd.f32 0.0, %v603
        %v605 = vpop.f32.mrb[0].mxu0
        %v606 = vadd.f32 0.0, %v605
        %607 = vmatprep.mubr.bf16.mxu0 0
        %608 = vmatmul.mubr.bf16.gmra.mrb[0].mxu0 %v354
        %v609 = vpop.f32.mrb[0].mxu0
        %v610 = vadd.f32 0.0, %v609
        %v611 = vpop.f32.mrb[0].mxu0
        %v612 = vadd.f32 0.0, %v611
        %v613 = vpop.f32.mrb[0].mxu0
        %v614 = vadd.f32 0.0, %v613
        %v615 = vpop.f32.mrb[0].mxu0
        %v616 = vadd.f32 0.0, %v615
        %617 = vmatprep.mubr.bf16.mxu0 0
        %618 = vmatmul.mubr.bf16.gmra.mrb[0].mxu0 %v355
        %v619 = vpop.f32.mrb[0].mxu0
        %v620 = vadd.f32 0.0, %v619
        %v621 = vpop.f32.mrb[0].mxu0
        %v622 = vadd.f32 0.0, %v621
        %v623 = vpop.f32.mrb[0].mxu0
        %v624 = vadd.f32 0.0, %v623
        %v625 = vpop.f32.mrb[0].mxu0
        %v626 = vadd.f32 0.0, %v625
        %627 = vmatprep.mubr.bf16.mxu0 0
        %628 = vmatmul.mubr.bf16.gmra.mrb[0].mxu0 %v356
        %v629 = vpop.f32.mrb[0].mxu0
        %v630 = vadd.f32 0.0, %v629
        %v631 = vpop.f32.mrb[0].mxu0
        %v632 = vadd.f32 0.0, %v631
        %v633 = vpop.f32.mrb[0].mxu0
        %v634 = vadd.f32 0.0, %v633
        %v635 = vpop.f32.mrb[0].mxu0
        %v636 = vadd.f32 0.0, %v635
        %637 = vmatprep.mubr.bf16.mxu0 0
        %638 = vmatmul.mubr.bf16.gmra.mrb[0].mxu0 %v357
        %v639 = vpop.f32.mrb[0].mxu0
        %v640 = vadd.f32 0.0, %v639
        %v641 = vpop.f32.mrb[0].mxu0
        %v642 = vadd.f32 0.0, %v641
        %v643 = vpop.f32.mrb[0].mxu0
        %v644 = vadd.f32 0.0, %v643
        %v645 = vpop.f32.mrb[0].mxu0
        %v646 = vadd.f32 0.0, %v645
        %647 = vmatprep.mubr.bf16.mxu0 0
        %648 = vmatmul.mubr.bf16.gmra.mrb[0].mxu0 %v358
        %v649 = vpop.f32.mrb[0].mxu0
        %v650 = vadd.f32 0.0, %v649
        %v651 = vpop.f32.mrb[0].mxu0
        %v652 = vadd.f32 0.0, %v651
        %v653 = vpop.f32.mrb[0].mxu0
        %v654 = vadd.f32 0.0, %v653
        %v655 = vpop.f32.mrb[0].mxu0
        %v656 = vadd.f32 0.0, %v655
        %657 = vmatprep.mubr.bf16.mxu0 0
        %658 = vmatmul.mubr.bf16.gmra.mrb[0].mxu0 %v359
        %v659 = vpop.f32.mrb[0].mxu0
        %v660 = vadd.f32 0.0, %v659
        %v661 = vpop.f32.mrb[0].mxu0
        %v662 = vadd.f32 0.0, %v661
        %v663 = vpop.f32.mrb[0].mxu0
        %v664 = vadd.f32 0.0, %v663
        %v665 = vpop.f32.mrb[0].mxu0
        %v666 = vadd.f32 0.0, %v665
        %667 = vmatprep.mubr.bf16.mxu0 0
        %668 = vmatmul.mubr.bf16.gmra.mrb[0].mxu0 %v360
        %v669 = vpop.f32.mrb[0].mxu0
        %v670 = vadd.f32 0.0, %v669
        %v671 = vpop.f32.mrb[0].mxu0
        %v672 = vadd.f32 0.0, %v671
        %v673 = vpop.f32.mrb[0].mxu0
        %v674 = vadd.f32 0.0, %v673
        %v675 = vpop.f32.mrb[0].mxu0
        %v676 = vadd.f32 0.0, %v675
        %677 = vmatprep.mubr.bf16.mxu0 0
        %678 = vmatmul.mubr.bf16.gmra.mrb[0].mxu0 %v361
        %v679 = vpop.f32.mrb[0].mxu0
        %v680 = vadd.f32 0.0, %v679
        %v681 = vpop.f32.mrb[0].mxu0
        %v682 = vadd.f32 0.0, %v681
        %v683 = vpop.f32.mrb[0].mxu0
        %v684 = vadd.f32 0.0, %v683
        %v685 = vpop.f32.mrb[0].mxu0
        %v686 = vadd.f32 0.0, %v685
        %687 = vmatprep.mubr.bf16.mxu0 0
        %688 = vmatmul.mubr.bf16.gmra.mrb[0].mxu0 %v362
        %v689 = vpop.f32.mrb[0].mxu0
        %v690 = vadd.f32 0.0, %v689
        %v691 = vpop.f32.mrb[0].mxu0
        %v692 = vadd.f32 0.0, %v691
        %v693 = vpop.f32.mrb[0].mxu0
        %v694 = vadd.f32 0.0, %v693
        %v695 = vpop.f32.mrb[0].mxu0
        %v696 = vadd.f32 0.0, %v695
        %697 = vmatprep.mubr.bf16.mxu0 0
        %698 = vmatmul.mubr.bf16.gmra.mrb[0].mxu0 %v363
        %v699 = vpop.f32.mrb[0].mxu0
        %v700 = vadd.f32 0.0, %v699
        %v701 = vpop.f32.mrb[0].mxu0
        %v702 = vadd.f32 0.0, %v701
        %v703 = vpop.f32.mrb[0].mxu0
        %v704 = vadd.f32 0.0, %v703
        %v705 = vpop.f32.mrb[0].mxu0
        %v706 = vadd.f32 0.0, %v705
        %707 = vmatprep.mubr.bf16.mxu0 0
        %708 = vmatmul.mubr.bf16.gmra.mrb[0].mxu0 %v364
        %v709 = vpop.f32.mrb[0].mxu0
        %v710 = vadd.f32 0.0, %v709
        %v711 = vpop.f32.mrb[0].mxu0
        %v712 = vadd.f32 0.0, %v711
        %v713 = vpop.f32.mrb[0].mxu0
        %v714 = vadd.f32 0.0, %v713
        %v715 = vpop.f32.mrb[0].mxu0
        %v716 = vadd.f32 0.0, %v715
        %717 = vdwg.mxu0
        %718 = vmatprep.subr.bf16.mxu0 0
        %719 = vmatpush1.bf16.msra.mxu0 %v479
        %720 = vmatprep.subr.bf16.mxu0 0
        %721 = vmatpush1.bf16.msra.mxu0 %v482
        %722 = vmatprep.subr.bf16.mxu0 0
        %723 = vmatpush1.bf16.msra.mxu0 %v485
        %724 = vmatprep.subr.bf16.mxu0 0
        %725 = vmatpush1.bf16.msra.mxu0 %v488
        %726 = vmatprep.subr.bf16.mxu0 0
        %727 = vmatpush1.bf16.msra.mxu0 %v491
        %728 = vmatprep.subr.bf16.mxu0 0
        %729 = vmatpush1.bf16.msra.mxu0 %v494
        %730 = vmatprep.subr.bf16.mxu0 0
        %731 = vmatpush1.bf16.msra.mxu0 %v497
        %732 = vmatprep.subr.bf16.mxu0 0
        %733 = vmatpush1.bf16.msra.mxu0 %v500
        %734 = vmatprep.subr.bf16.mxu0 0
        %735 = vmatpush1.bf16.msra.mxu0 0
        %736 = vmatprep.subr.bf16.mxu0 0
        %737 = vmatpush1.bf16.msra.mxu0 0
        %738 = vmatprep.subr.bf16.mxu0 0
        %739 = vmatpush1.bf16.msra.mxu0 0
        %740 = vmatprep.subr.bf16.mxu0 0
        %741 = vmatpush1.bf16.msra.mxu0 0
        %742 = vmatprep.subr.bf16.mxu0 0
        %743 = vmatpush1.bf16.msra.mxu0 0
        %744 = vmatprep.subr.bf16.mxu0 0
        %745 = vmatpush1.bf16.msra.mxu0 0
        %746 = vmatprep.subr.bf16.mxu0 0
        %747 = vmatpush1.bf16.msra.mxu0 0
        %748 = vmatprep.subr.bf16.mxu0 0
        %749 = vmatpush1.bf16.msra.mxu0 0
        %750 = vmatprep.mubr.bf16.mxu0 0
        %751 = vmatmul.mubr.bf16.gmra.mrb[0].mxu0 %v349
        %v752 = vpop.f32.mrb[0].mxu0
        %v753 = vadd.f32 0.0, %v752
        %v754 = vpop.f32.mrb[0].mxu0
        %v755 = vpop.f32.mrb[0].mxu0
        %v756 = vadd.f32 0.0, %v755
        %v757 = vpop.f32.mrb[0].mxu0
        %758 = vmatprep.mubr.bf16.mxu0 0
        %759 = vmatmul.mubr.bf16.gmra.mrb[0].mxu0 %v350
        %v760 = vpop.f32.mrb[0].mxu0
        %v761 = vadd.f32 0.0, %v760
        %v762 = vpop.f32.mrb[0].mxu0
        %v763 = vpop.f32.mrb[0].mxu0
        %v764 = vadd.f32 0.0, %v763
        %v765 = vpop.f32.mrb[0].mxu0
        %766 = vmatprep.mubr.bf16.mxu0 0
        %767 = vmatmul.mubr.bf16.gmra.mrb[0].mxu0 %v351
        %v768 = vpop.f32.mrb[0].mxu0
        %v769 = vadd.f32 0.0, %v768
        %v770 = vpop.f32.mrb[0].mxu0
        %v771 = vpop.f32.mrb[0].mxu0
        %v772 = vadd.f32 0.0, %v771
        %v773 = vpop.f32.mrb[0].mxu0
        %774 = vmatprep.mubr.bf16.mxu0 0
        %775 = vmatmul.mubr.bf16.gmra.mrb[0].mxu0 %v352
        %v776 = vpop.f32.mrb[0].mxu0
        %v777 = vadd.f32 0.0, %v776
        %v778 = vpop.f32.mrb[0].mxu0
        %v779 = vpop.f32.mrb[0].mxu0
        %v780 = vadd.f32 0.0, %v779
        %v781 = vpop.f32.mrb[0].mxu0
        %782 = vmatprep.mubr.bf16.mxu0 0
        %783 = vmatmul.mubr.bf16.gmra.mrb[0].mxu0 %v353
        %v784 = vpop.f32.mrb[0].mxu0
        %v785 = vadd.f32 0.0, %v784
        %v786 = vpop.f32.mrb[0].mxu0
        %v787 = vpop.f32.mrb[0].mxu0
        %v788 = vadd.f32 0.0, %v787
        %v789 = vpop.f32.mrb[0].mxu0
        %790 = vmatprep.mubr.bf16.mxu0 0
        %791 = vmatmul.mubr.bf16.gmra.mrb[0].mxu0 %v354
        %v792 = vpop.f32.mrb[0].mxu0
        %v793 = vadd.f32 0.0, %v792
        %v794 = vpop.f32.mrb[0].mxu0
        %v795 = vpop.f32.mrb[0].mxu0
        %v796 = vadd.f32 0.0, %v795
        %v797 = vpop.f32.mrb[0].mxu0
        %798 = vmatprep.mubr.bf16.mxu0 0
        %799 = vmatmul.mubr.bf16.gmra.mrb[0].mxu0 %v355
        %v800 = vpop.f32.mrb[0].mxu0
        %v801 = vadd.f32 0.0, %v800
        %v802 = vpop.f32.mrb[0].mxu0
        %v803 = vpop.f32.mrb[0].mxu0
        %v804 = vadd.f32 0.0, %v803
        %v805 = vpop.f32.mrb[0].mxu0
        %806 = vmatprep.mubr.bf16.mxu0 0
        %807 = vmatmul.mubr.bf16.gmra.mrb[0].mxu0 %v356
        %v808 = vpop.f32.mrb[0].mxu0
        %v809 = vadd.f32 0.0, %v808
        %v810 = vpop.f32.mrb[0].mxu0
        %v811 = vpop.f32.mrb[0].mxu0
        %v812 = vadd.f32 0.0, %v811
        %v813 = vpop.f32.mrb[0].mxu0
        %814 = vmatprep.mubr.bf16.mxu0 0
        %815 = vmatmul.mubr.bf16.gmra.mrb[0].mxu0 %v357
        %v816 = vpop.f32.mrb[0].mxu0
        %v817 = vadd.f32 0.0, %v816
        %v818 = vpop.f32.mrb[0].mxu0
        %v819 = vpop.f32.mrb[0].mxu0
        %v820 = vadd.f32 0.0, %v819
        %v821 = vpop.f32.mrb[0].mxu0
        %822 = vmatprep.mubr.bf16.mxu0 0
        %823 = vmatmul.mubr.bf16.gmra.mrb[0].mxu0 %v358
        %v824 = vpop.f32.mrb[0].mxu0
        %v825 = vadd.f32 0.0, %v824
        %v826 = vpop.f32.mrb[0].mxu0
        %v827 = vpop.f32.mrb[0].mxu0
        %v828 = vadd.f32 0.0, %v827
        %v829 = vpop.f32.mrb[0].mxu0
        %830 = vmatprep.mubr.bf16.mxu0 0
        %831 = vmatmul.mubr.bf16.gmra.mrb[0].mxu0 %v359
        %v832 = vpop.f32.mrb[0].mxu0
        %v833 = vadd.f32 0.0, %v832
        %v834 = vpop.f32.mrb[0].mxu0
        %v835 = vpop.f32.mrb[0].mxu0
        %v836 = vadd.f32 0.0, %v835
        %v837 = vpop.f32.mrb[0].mxu0
        %838 = vmatprep.mubr.bf16.mxu0 0
        %839 = vmatmul.mubr.bf16.gmra.mrb[0].mxu0 %v360
        %v840 = vpop.f32.mrb[0].mxu0
        %v841 = vadd.f32 0.0, %v840
        %v842 = vpop.f32.mrb[0].mxu0
        %v843 = vpop.f32.mrb[0].mxu0
        %v844 = vadd.f32 0.0, %v843
        %v845 = vpop.f32.mrb[0].mxu0
        %846 = vmatprep.mubr.bf16.mxu0 0
        %847 = vmatmul.mubr.bf16.gmra.mrb[0].mxu0 %v361
        %v848 = vpop.f32.mrb[0].mxu0
        %v849 = vadd.f32 0.0, %v848
        %v850 = vpop.f32.mrb[0].mxu0
        %v851 = vpop.f32.mrb[0].mxu0
        %v852 = vadd.f32 0.0, %v851
        %v853 = vpop.f32.mrb[0].mxu0
        %854 = vmatprep.mubr.bf16.mxu0 0
        %855 = vmatmul.mubr.bf16.gmra.mrb[0].mxu0 %v362
        %v856 = vpop.f32.mrb[0].mxu0
        %v857 = vadd.f32 0.0, %v856
        %v858 = vpop.f32.mrb[0].mxu0
        %v859 = vpop.f32.mrb[0].mxu0
        %v860 = vadd.f32 0.0, %v859
        %v861 = vpop.f32.mrb[0].mxu0
        %862 = vmatprep.mubr.bf16.mxu0 0
        %863 = vmatmul.mubr.bf16.gmra.mrb[0].mxu0 %v363
        %v864 = vpop.f32.mrb[0].mxu0
        %v865 = vadd.f32 0.0, %v864
        %v866 = vpop.f32.mrb[0].mxu0
        %v867 = vpop.f32.mrb[0].mxu0
        %v868 = vadd.f32 0.0, %v867
        %v869 = vpop.f32.mrb[0].mxu0
        %870 = vmatprep.mubr.bf16.mxu0 0
        %871 = vmatmul.mubr.bf16.gmra.mrb[0].mxu0 %v364
        %v872 = vpop.f32.mrb[0].mxu0
        %v873 = vadd.f32 0.0, %v872
        %v874 = vpop.f32.mrb[0].mxu0
        %v875 = vpop.f32.mrb[0].mxu0
        %v876 = vadd.f32 0.0, %v875
        %v877 = vpop.f32.mrb[0].mxu0
        %878 = vdwg.mxu0
        %v879 = vmax.f32 %v562, %v582
        %v880 = vmax.f32 %v566, %v586
        %v881 = vmax.f32 %v572, %v592
        %v882 = vmax.f32 %v576, %v596
        %v883 = vmax.f32 %v879, %v602
        %v884 = vmax.f32 %v880, %v606
        %v885 = vmax.f32 %v881, %v612
        %v886 = vmax.f32 %v882, %v616
        %v887 = vmax.f32 %v883, %v622
        %v888 = vmax.f32 %v884, %v626
        %v889 = vmax.f32 %v885, %v632
        %v890 = vmax.f32 %v886, %v636
        %v891 = vmax.f32 %v887, %v642
        %v892 = vmax.f32 %v888, %v646
        %v893 = vmax.f32 %v889, %v652
        %v894 = vmax.f32 %v890, %v656
        %v895 = vmax.f32 %v891, %v662
        %v896 = vmax.f32 %v892, %v666
        %v897 = vmax.f32 %v893, %v672
        %v898 = vmax.f32 %v894, %v676
        %v899 = vmax.f32 %v895, %v682
        %v900 = vmax.f32 %v896, %v686
        %v901 = vmax.f32 %v897, %v692
        %v902 = vmax.f32 %v898, %v696
        %v903 = vmax.f32 %v899, %v702
        %v904 = vmax.f32 %v900, %v706
        %v905 = vmax.f32 %v901, %v712
        %v906 = vmax.f32 %v902, %v716
        %v907 = vmax.f32 %v903, %v904
        %v908 = vmax.f32 %v905, %v906
        %v909 = vmax.f32 %v907, %v908
        %v910 = vrot.slane %v909, 4
        %v911 = vmax.f32 %v909, %v910
        %v912 = vrot.slane %v911, 2
        %v913 = vmax.f32 %v911, %v912
        %v914 = vrot.slane %v913, 1
        %v915 = vmax.f32 %v913, %v914
        %v916 = vsub.f32 %v562, %v915
        %v917 = vsub.f32 %v566, %v915
        %v918 = vsub.f32 %v572, %v915
        %v919 = vsub.f32 %v576, %v915
        %v920 = vsub.f32 %v582, %v915
        %v921 = vsub.f32 %v586, %v915
        %v922 = vsub.f32 %v592, %v915
        %v923 = vsub.f32 %v596, %v915
        %v924 = vsub.f32 %v602, %v915
        %v925 = vsub.f32 %v606, %v915
        %v926 = vsub.f32 %v612, %v915
        %v927 = vsub.f32 %v616, %v915
        %v928 = vsub.f32 %v622, %v915
        %v929 = vsub.f32 %v626, %v915
        %v930 = vsub.f32 %v632, %v915
        %v931 = vsub.f32 %v636, %v915
        %v932 = vsub.f32 %v642, %v915
        %v933 = vsub.f32 %v646, %v915
        %v934 = vsub.f32 %v652, %v915
        %v935 = vsub.f32 %v656, %v915
        %v936 = vsub.f32 %v662, %v915
        %v937 = vsub.f32 %v666, %v915
        %v938 = vsub.f32 %v672, %v915
        %v939 = vsub.f32 %v676, %v915
        %v940 = vsub.f32 %v682, %v915
        %v941 = vsub.f32 %v686, %v915
        %v942 = vsub.f32 %v692, %v915
        %v943 = vsub.f32 %v696, %v915
        %v944 = vsub.f32 %v702, %v915
        %v945 = vsub.f32 %v706, %v915
        %v946 = vsub.f32 %v712, %v915
        %v947 = vsub.f32 %v716, %v915
        %v948 = vmul.f32 %v916, 1.442695
        %v949 = vpow.pop %v948
        %v950 = vmul.f32 %v917, 1.442695
        %v951 = vpow.pop %v950
        %v952 = vmul.f32 %v918, 1.442695
        %v953 = vpow.pop %v952
        %v954 = vmul.f32 %v919, 1.442695
        %v955 = vpow.pop %v954
        %v956 = vmul.f32 %v920, 1.442695
        %v957 = vpow.pop %v956
        %v958 = vmul.f32 %v921, 1.442695
        %v959 = vpow.pop %v958
        %v960 = vmul.f32 %v922, 1.442695
        %v961 = vpow.pop %v960
        %v962 = vmul.f32 %v923, 1.442695
        %v963 = vpow.pop %v962
        %v964 = vmul.f32 %v924, 1.442695
        %v965 = vpow.pop %v964
        %v966 = vmul.f32 %v925, 1.442695
        %v967 = vpow.pop %v966
        %v968 = vmul.f32 %v926, 1.442695
        %v969 = vpow.pop %v968
        %v970 = vmul.f32 %v927, 1.442695
        %v971 = vpow.pop %v970
        %v972 = vmul.f32 %v928, 1.442695
        %v973 = vpow.pop %v972
        %v974 = vmul.f32 %v929, 1.442695
        %v975 = vpow.pop %v974
        %v976 = vmul.f32 %v930, 1.442695
        %v977 = vpow.pop %v976
        %v978 = vmul.f32 %v931, 1.442695
        %v979 = vpow.pop %v978
        %v980 = vmul.f32 %v932, 1.442695
        %v981 = vpow.pop %v980
        %v982 = vmul.f32 %v933, 1.442695
        %v983 = vpow.pop %v982
        %v984 = vmul.f32 %v934, 1.442695
        %v985 = vpow.pop %v984
        %v986 = vmul.f32 %v935, 1.442695
        %v987 = vpow.pop %v986
        %v988 = vmul.f32 %v936, 1.442695
        %v989 = vpow.pop %v988
        %v990 = vmul.f32 %v937, 1.442695
        %v991 = vpow.pop %v990
        %v992 = vmul.f32 %v938, 1.442695
        %v993 = vpow.pop %v992
        %v994 = vmul.f32 %v939, 1.442695
        %v995 = vpow.pop %v994
        %v996 = vmul.f32 %v940, 1.442695
        %v997 = vpow.pop %v996
        %v998 = vmul.f32 %v941, 1.442695
        %v999 = vpow.pop %v998
        %v1000 = vmul.f32 %v942, 1.442695
        %v1001 = vpow.pop %v1000
        %v1002 = vmul.f32 %v943, 1.442695
        %v1003 = vpow.pop %v1002
        %v1004 = vmul.f32 %v944, 1.442695
        %v1005 = vpow.pop %v1004
        %v1006 = vmul.f32 %v945, 1.442695
        %v1007 = vpow.pop %v1006
        %v1008 = vmul.f32 %v946, 1.442695
        %v1009 = vpow.pop %v1008
        %v1010 = vmul.f32 %v947, 1.442695
        %v1011 = vpow.pop %v1010
        %v1012 = vadd.f32 %v949, %v951
        %v1013 = vadd.f32 %v1012, %v953
        %v1014 = vadd.f32 %v1013, %v955
        %v1015 = vadd.f32 %v1014, %v957
        %v1016 = vadd.f32 %v1015, %v959
        %v1017 = vadd.f32 %v1016, %v961
        %v1018 = vadd.f32 %v1017, %v963
        %v1019 = vadd.f32 %v1018, %v965
        %v1020 = vadd.f32 %v1019, %v967
        %v1021 = vadd.f32 %v1020, %v969
        %v1022 = vadd.f32 %v1021, %v971
        %v1023 = vadd.f32 %v1022, %v973
        %v1024 = vadd.f32 %v1023, %v975
        %v1025 = vadd.f32 %v1024, %v977
        %v1026 = vadd.f32 %v1025, %v979
        %v1027 = vadd.f32 %v1026, %v981
        %v1028 = vadd.f32 %v1027, %v983
        %v1029 = vadd.f32 %v1028, %v985
        %v1030 = vadd.f32 %v1029, %v987
        %v1031 = vadd.f32 %v1030, %v989
        %v1032 = vadd.f32 %v1031, %v991
        %v1033 = vadd.f32 %v1032, %v993
        %v1034 = vadd.f32 %v1033, %v995
        %v1035 = vadd.f32 %v1034, %v997
        %v1036 = vadd.f32 %v1035, %v999
        %v1037 = vadd.f32 %v1036, %v1001
        %v1038 = vadd.f32 %v1037, %v1003
        %v1039 = vadd.f32 %v1038, %v1005
        %v1040 = vadd.f32 %v1039, %v1007
        %v1041 = vadd.f32 %v1040, %v1009
        %v1042 = vadd.f32 %v1041, %v1011
        %v1043 = vrot.slane %v1042, 4
        %v1044 = vadd.f32 %v1042, %v1043
        %v1045 = vrot.slane %v1044, 2
        %v1046 = vadd.f32 %v1044, %v1045
        %v1047 = vrot.slane %v1046, 1
        %v1048 = vadd.f32 %v1046, %v1047
        %v1049 = vrcp.pop %v1048
        %v1050 = vmul.f32 %v949, %v1049
        %v1051 = vmul.f32 %v951, %v1049
        %v1052 = vmul.f32 %v953, %v1049
        %v1053 = vmul.f32 %v955, %v1049
        %v1054 = vmul.f32 %v957, %v1049
        %v1055 = vmul.f32 %v959, %v1049
        %v1056 = vmul.f32 %v961, %v1049
        %v1057 = vmul.f32 %v963, %v1049
        %v1058 = vmul.f32 %v965, %v1049
        %v1059 = vmul.f32 %v967, %v1049
        %v1060 = vmul.f32 %v969, %v1049
        %v1061 = vmul.f32 %v971, %v1049
        %v1062 = vmul.f32 %v973, %v1049
        %v1063 = vmul.f32 %v975, %v1049
        %v1064 = vmul.f32 %v977, %v1049
        %v1065 = vmul.f32 %v979, %v1049
        %v1066 = vmul.f32 %v981, %v1049
        %v1067 = vmul.f32 %v983, %v1049
        %v1068 = vmul.f32 %v985, %v1049
        %v1069 = vmul.f32 %v987, %v1049
        %v1070 = vmul.f32 %v989, %v1049
        %v1071 = vmul.f32 %v991, %v1049
        %v1072 = vmul.f32 %v993, %v1049
        %v1073 = vmul.f32 %v995, %v1049
        %v1074 = vmul.f32 %v997, %v1049
        %v1075 = vmul.f32 %v999, %v1049
        %v1076 = vmul.f32 %v1001, %v1049
        %v1077 = vmul.f32 %v1003, %v1049
        %v1078 = vmul.f32 %v1005, %v1049
        %v1079 = vmul.f32 %v1007, %v1049
        %v1080 = vmul.f32 %v1009, %v1049
        %v1081 = vmul.f32 %v1011, %v1049
        %v1082 = vpack.c.bf16 %v1051, %v1050
        %v1083 = vpack.c.bf16 %v1053, %v1052
        %v1084 = vpack.c.bf16 %v1055, %v1054
        %v1085 = vpack.c.bf16 %v1057, %v1056
        %v1086 = vpack.c.bf16 %v1059, %v1058
        %v1087 = vpack.c.bf16 %v1061, %v1060
        %v1088 = vpack.c.bf16 %v1063, %v1062
        %v1089 = vpack.c.bf16 %v1065, %v1064
        %v1090 = vpack.c.bf16 %v1067, %v1066
        %v1091 = vpack.c.bf16 %v1069, %v1068
        %v1092 = vpack.c.bf16 %v1071, %v1070
        %v1093 = vpack.c.bf16 %v1073, %v1072
        %v1094 = vpack.c.bf16 %v1075, %v1074
        %v1095 = vpack.c.bf16 %v1077, %v1076
        %v1096 = vpack.c.bf16 %v1079, %v1078
        %v1097 = vpack.c.bf16 %v1081, %v1080
        %v1098 = vpack.c.bf16 %v756, %v753
        %v1099 = vpack.c.bf16 %v764, %v761
        %v1100 = vpack.c.bf16 %v772, %v769
        %v1101 = vpack.c.bf16 %v780, %v777
        %v1102 = vpack.c.bf16 %v788, %v785
        %v1103 = vpack.c.bf16 %v796, %v793
        %v1104 = vpack.c.bf16 %v804, %v801
        %v1105 = vpack.c.bf16 %v812, %v809
        %v1106 = vpack.c.bf16 %v820, %v817
        %v1107 = vpack.c.bf16 %v828, %v825
        %v1108 = vpack.c.bf16 %v836, %v833
        %v1109 = vpack.c.bf16 %v844, %v841
        %v1110 = vpack.c.bf16 %v852, %v849
        %v1111 = vpack.c.bf16 %v860, %v857
        %v1112 = vpack.c.bf16 %v868, %v865
        %v1113 = vpack.c.bf16 %v876, %v873
        %1114 = vxpose.xlu0.c.b16.start [1/8] %v1082, 128
        %1115 = vxpose.xlu0.c.b16.cont [2/8] %v1083, 128
        %1116 = vxpose.xlu0.c.b16.cont [3/8] %v1084, 128
        %1117 = vxpose.xlu0.c.b16.cont [4/8] %v1085, 128
        %1118 = vxpose.xlu0.c.b16.cont [5/8] %v1086, 128
        %1119 = vxpose.xlu0.c.b16.cont [6/8] %v1087, 128
        %1120 = vxpose.xlu0.c.b16.cont [7/8] %v1088, 128
        %1121 = vxpose.xlu0.c.b16.end [8/8] %v1089, 128
        %v1122 = vpop.trf.xlu0
        %v1123 = vpop.trf.xlu0
        %v1124 = vpop.trf.xlu0
        %v1125 = vpop.trf.xlu0
        %v1126 = vpop.trf.xlu0
        %v1127 = vpop.trf.xlu0
        %v1128 = vpop.trf.xlu0
        %v1129 = vpop.trf.xlu0
        %1130 = vxpose.xlu0.c.b16.start [1/8] %v1090, 128
        %1131 = vxpose.xlu0.c.b16.cont [2/8] %v1091, 128
        %1132 = vxpose.xlu0.c.b16.cont [3/8] %v1092, 128
        %1133 = vxpose.xlu0.c.b16.cont [4/8] %v1093, 128
        %1134 = vxpose.xlu0.c.b16.cont [5/8] %v1094, 128
        %1135 = vxpose.xlu0.c.b16.cont [6/8] %v1095, 128
        %1136 = vxpose.xlu0.c.b16.cont [7/8] %v1096, 128
        %1137 = vxpose.xlu0.c.b16.end [8/8] %v1097, 128
        %v1138 = vpop.trf.xlu0
        %v1139 = vpop.trf.xlu0
        %v1140 = vpop.trf.xlu0
        %v1141 = vpop.trf.xlu0
        %v1142 = vpop.trf.xlu0
        %v1143 = vpop.trf.xlu0
        %v1144 = vpop.trf.xlu0
        %v1145 = vpop.trf.xlu0
        %1146 = vmatprep.subr.bf16.mxu0 0
        %1147 = vmatpush1.bf16.msra.mxu0 %v1098
        %1148 = vmatprep.subr.bf16.mxu0 0
        %1149 = vmatpush1.bf16.msra.mxu0 %v1099
        %1150 = vmatprep.subr.bf16.mxu0 0
        %1151 = vmatpush1.bf16.msra.mxu0 %v1100
        %1152 = vmatprep.subr.bf16.mxu0 0
        %1153 = vmatpush1.bf16.msra.mxu0 %v1101
        %1154 = vmatprep.subr.bf16.mxu0 0
        %1155 = vmatpush1.bf16.msra.mxu0 %v1102
        %1156 = vmatprep.subr.bf16.mxu0 0
        %1157 = vmatpush1.bf16.msra.mxu0 %v1103
        %1158 = vmatprep.subr.bf16.mxu0 0
        %1159 = vmatpush1.bf16.msra.mxu0 %v1104
        %1160 = vmatprep.subr.bf16.mxu0 0
        %1161 = vmatpush1.bf16.msra.mxu0 %v1105
        %1162 = vmatprep.subr.bf16.mxu0 0
        %1163 = vmatpush1.bf16.msra.mxu0 %v1106
        %1164 = vmatprep.subr.bf16.mxu0 0
        %1165 = vmatpush1.bf16.msra.mxu0 %v1107
        %1166 = vmatprep.subr.bf16.mxu0 0
        %1167 = vmatpush1.bf16.msra.mxu0 %v1108
        %1168 = vmatprep.subr.bf16.mxu0 0
        %1169 = vmatpush1.bf16.msra.mxu0 %v1109
        %1170 = vmatprep.subr.bf16.mxu0 0
        %1171 = vmatpush1.bf16.msra.mxu0 %v1110
        %1172 = vmatprep.subr.bf16.mxu0 0
        %1173 = vmatpush1.bf16.msra.mxu0 %v1111
        %1174 = vmatprep.subr.bf16.mxu0 0
        %1175 = vmatpush1.bf16.msra.mxu0 %v1112
        %1176 = vmatprep.subr.bf16.mxu0 0
        %1177 = vmatpush1.bf16.msra.mxu0 %v1113
        %1178 = vmatprep.mubr.bf16.mxu0 %v1138
        %1179 = vmatmul.mubr.bf16.gmra.mrb[0].mxu0 %v1122
        %v1180 = vpop.f32.mrb[0].mxu0
        %v1181 = vadd.f32 0.0, %v1180
        %v1182 = vpop.f32.mrb[0].mxu0
        %v1183 = vpop.f32.mrb[0].mxu0
        %v1184 = vadd.f32 0.0, %v1183
        %v1185 = vpop.f32.mrb[0].mxu0
        %1186 = vmatprep.mubr.bf16.mxu0 %v1139
        %1187 = vmatmul.mubr.bf16.gmra.mrb[0].mxu0 %v1123
        %v1188 = vpop.f32.mrb[0].mxu0
        %v1189 = vadd.f32 0.0, %v1188
        %v1190 = vpop.f32.mrb[0].mxu0
        %v1191 = vpop.f32.mrb[0].mxu0
        %v1192 = vadd.f32 0.0, %v1191
        %v1193 = vpop.f32.mrb[0].mxu0
        %1194 = vmatprep.mubr.bf16.mxu0 %v1140
        %1195 = vmatmul.mubr.bf16.gmra.mrb[0].mxu0 %v1124
        %v1196 = vpop.f32.mrb[0].mxu0
        %v1197 = vadd.f32 0.0, %v1196
        %v1198 = vpop.f32.mrb[0].mxu0
        %v1199 = vpop.f32.mrb[0].mxu0
        %v1200 = vadd.f32 0.0, %v1199
        %v1201 = vpop.f32.mrb[0].mxu0
        %1202 = vmatprep.mubr.bf16.mxu0 %v1141
        %1203 = vmatmul.mubr.bf16.gmra.mrb[0].mxu0 %v1125
        %v1204 = vpop.f32.mrb[0].mxu0
        %v1205 = vadd.f32 0.0, %v1204
        %v1206 = vpop.f32.mrb[0].mxu0
        %v1207 = vpop.f32.mrb[0].mxu0
        %v1208 = vadd.f32 0.0, %v1207
        %v1209 = vpop.f32.mrb[0].mxu0
        %1210 = vmatprep.mubr.bf16.mxu0 %v1142
        %1211 = vmatmul.mubr.bf16.gmra.mrb[0].mxu0 %v1126
        %v1212 = vpop.f32.mrb[0].mxu0
        %v1213 = vadd.f32 0.0, %v1212
        %v1214 = vpop.f32.mrb[0].mxu0
        %v1215 = vpop.f32.mrb[0].mxu0
        %v1216 = vadd.f32 0.0, %v1215
        %v1217 = vpop.f32.mrb[0].mxu0
        %1218 = vmatprep.mubr.bf16.mxu0 %v1143
        %1219 = vmatmul.mubr.bf16.gmra.mrb[0].mxu0 %v1127
        %v1220 = vpop.f32.mrb[0].mxu0
        %v1221 = vadd.f32 0.0, %v1220
        %v1222 = vpop.f32.mrb[0].mxu0
        %v1223 = vpop.f32.mrb[0].mxu0
        %v1224 = vadd.f32 0.0, %v1223
        %v1225 = vpop.f32.mrb[0].mxu0
        %1226 = vmatprep.mubr.bf16.mxu0 %v1144
        %1227 = vmatmul.mubr.bf16.gmra.mrb[0].mxu0 %v1128
        %v1228 = vpop.f32.mrb[0].mxu0
        %v1229 = vadd.f32 0.0, %v1228
        %v1230 = vpop.f32.mrb[0].mxu0
        %v1231 = vpop.f32.mrb[0].mxu0
        %v1232 = vadd.f32 0.0, %v1231
        %v1233 = vpop.f32.mrb[0].mxu0
        %1234 = vmatprep.mubr.bf16.mxu0 %v1145
        %1235 = vmatmul.mubr.bf16.gmra.mrb[0].mxu0 %v1129
        %v1236 = vpop.f32.mrb[0].mxu0
        %v1237 = vadd.f32 0.0, %v1236
        %v1238 = vpop.f32.mrb[0].mxu0
        %v1239 = vpop.f32.mrb[0].mxu0
        %v1240 = vadd.f32 0.0, %v1239
        %v1241 = vpop.f32.mrb[0].mxu0
        %1242 = vdwg.mxu0
        %v1243 = vld [vmem:[#allocation9] sm:$0xff]
        %v1244 = vld [vmem:[#allocation9 + $0x8] sm:$0xff]
        %v1245 = vld [vmem:[#allocation9 + $0x10] sm:$0xff]
        %v1246 = vld [vmem:[#allocation9 + $0x18] sm:$0xff]
        %v1247 = vld [vmem:[#allocation9 + $0x20] sm:$0xff]
        %v1248 = vld [vmem:[#allocation9 + $0x28] sm:$0xff]
        %v1249 = vld [vmem:[#allocation9 + $0x30] sm:$0xff]
        %v1250 = vld [vmem:[#allocation9 + $0x38] sm:$0xff]
        %v1251 = vld [vmem:[#allocation9 + $0x40] sm:$0xff]
        %v1252 = vld [vmem:[#allocation9 + $0x48] sm:$0xff]
        %v1253 = vld [vmem:[#allocation9 + $0x50] sm:$0xff]
        %v1254 = vld [vmem:[#allocation9 + $0x58] sm:$0xff]
        %v1255 = vld [vmem:[#allocation9 + $0x60] sm:$0xff]
        %v1256 = vld [vmem:[#allocation9 + $0x68] sm:$0xff]
        %v1257 = vld [vmem:[#allocation9 + $0x70] sm:$0xff]
        %v1258 = vld [vmem:[#allocation9 + $0x78] sm:$0xff]
        %v1259 = vmul.f32 %v1181, %v1243
        %v1260 = vmul.f32 %v1184, %v1244
        %v1261 = vmul.f32 %v1189, %v1245
        %v1262 = vmul.f32 %v1192, %v1246
        %v1263 = vmul.f32 %v1197, %v1247
        %v1264 = vmul.f32 %v1200, %v1248
        %v1265 = vmul.f32 %v1205, %v1249
        %v1266 = vmul.f32 %v1208, %v1250
        %v1267 = vmul.f32 %v1213, %v1251
        %v1268 = vmul.f32 %v1216, %v1252
        %v1269 = vmul.f32 %v1221, %v1253
        %v1270 = vmul.f32 %v1224, %v1254
        %v1271 = vmul.f32 %v1229, %v1255
        %v1272 = vmul.f32 %v1232, %v1256
        %v1273 = vmul.f32 %v1237, %v1257
        %v1274 = vmul.f32 %v1240, %v1258
        %v1275 = vpack.c.bf16 %v564, %v560
        %v1276 = vpack.c.bf16 %v574, %v570
        %v1277 = vpack.c.bf16 %v584, %v580
        %v1278 = vpack.c.bf16 %v594, %v590
        %v1279 = vpack.c.bf16 %v604, %v600
        %v1280 = vpack.c.bf16 %v614, %v610
        %v1281 = vpack.c.bf16 %v624, %v620
        %v1282 = vpack.c.bf16 %v634, %v630
        %v1283 = vpack.c.bf16 %v644, %v640
        %v1284 = vpack.c.bf16 %v654, %v650
        %v1285 = vpack.c.bf16 %v664, %v660
        %v1286 = vpack.c.bf16 %v674, %v670
        %v1287 = vpack.c.bf16 %v684, %v680
        %v1288 = vpack.c.bf16 %v694, %v690
        %v1289 = vpack.c.bf16 %v704, %v700
        %v1290 = vpack.c.bf16 %v714, %v710
        %v1291 = vpack.c.bf16 %v1260, %v1259
        %v1292 = vpack.c.bf16 %v1262, %v1261
        %v1293 = vpack.c.bf16 %v1264, %v1263
        %v1294 = vpack.c.bf16 %v1266, %v1265
        %v1295 = vpack.c.bf16 %v1268, %v1267
        %v1296 = vpack.c.bf16 %v1270, %v1269
        %v1297 = vpack.c.bf16 %v1272, %v1271
        %v1298 = vpack.c.bf16 %v1274, %v1273
        %1299 = vmatprep.subr.bf16.mxu0 0
        %1300 = vmatpush1.bf16.msra.mxu0 %v1291
        %1301 = vmatprep.subr.bf16.mxu0 0
        %1302 = vmatpush1.bf16.msra.mxu0 %v1292
        %1303 = vmatprep.subr.bf16.mxu0 0
        %1304 = vmatpush1.bf16.msra.mxu0 %v1293
        %1305 = vmatprep.subr.bf16.mxu0 0
        %1306 = vmatpush1.bf16.msra.mxu0 %v1294
        %1307 = vmatprep.subr.bf16.mxu0 0
        %1308 = vmatpush1.bf16.msra.mxu0 %v1295
        %1309 = vmatprep.subr.bf16.mxu0 0
        %1310 = vmatpush1.bf16.msra.mxu0 %v1296
        %1311 = vmatprep.subr.bf16.mxu0 0
        %1312 = vmatpush1.bf16.msra.mxu0 %v1297
        %1313 = vmatprep.subr.bf16.mxu0 0
        %1314 = vmatpush1.bf16.msra.mxu0 %v1298
        %1315 = vmatprep.subr.bf16.mxu0 0
        %1316 = vmatpush1.bf16.msra.mxu0 0
        %1317 = vmatprep.subr.bf16.mxu0 0
        %1318 = vmatpush1.bf16.msra.mxu0 0
        %1319 = vmatprep.subr.bf16.mxu0 0
        %1320 = vmatpush1.bf16.msra.mxu0 0
        %1321 = vmatprep.subr.bf16.mxu0 0
        %1322 = vmatpush1.bf16.msra.mxu0 0
        %1323 = vmatprep.subr.bf16.mxu0 0
        %1324 = vmatpush1.bf16.msra.mxu0 0
        %1325 = vmatprep.subr.bf16.mxu0 0
        %1326 = vmatpush1.bf16.msra.mxu0 0
        %1327 = vmatprep.subr.bf16.mxu0 0
        %1328 = vmatpush1.bf16.msra.mxu0 0
        %1329 = vmatprep.subr.bf16.mxu0 0
        %1330 = vmatpush1.bf16.msra.mxu0 0
        %1331 = vmatprep.mubr.bf16.mxu0 0
        %1332 = vmatmul.mubr.bf16.gmra.mrb[0].mxu0 %v1275
        %v1333 = vpop.f32.mrb[0].mxu0
        %v1334 = vadd.f32 0.0, %v1333
        %v1335 = vpop.f32.mrb[0].mxu0
        %v1336 = vpop.f32.mrb[0].mxu0
        %v1337 = vadd.f32 0.0, %v1336
        %v1338 = vpop.f32.mrb[0].mxu0
        %1339 = vmatprep.mubr.bf16.mxu0 0
        %1340 = vmatmul.mubr.bf16.gmra.mrb[0].mxu0 %v1276
        %v1341 = vpop.f32.mrb[0].mxu0
        %v1342 = vadd.f32 0.0, %v1341
        %v1343 = vpop.f32.mrb[0].mxu0
        %v1344 = vpop.f32.mrb[0].mxu0
        %v1345 = vadd.f32 0.0, %v1344
        %v1346 = vpop.f32.mrb[0].mxu0
        %1347 = vmatprep.mubr.bf16.mxu0 0
        %1348 = vmatmul.mubr.bf16.gmra.mrb[0].mxu0 %v1277
        %v1349 = vpop.f32.mrb[0].mxu0
        %v1350 = vadd.f32 0.0, %v1349
        %v1351 = vpop.f32.mrb[0].mxu0
        %v1352 = vpop.f32.mrb[0].mxu0
        %v1353 = vadd.f32 0.0, %v1352
        %v1354 = vpop.f32.mrb[0].mxu0
        %1355 = vmatprep.mubr.bf16.mxu0 0
        %1356 = vmatmul.mubr.bf16.gmra.mrb[0].mxu0 %v1278
        %v1357 = vpop.f32.mrb[0].mxu0
        %v1358 = vadd.f32 0.0, %v1357
        %v1359 = vpop.f32.mrb[0].mxu0
        %v1360 = vpop.f32.mrb[0].mxu0
        %v1361 = vadd.f32 0.0, %v1360
        %v1362 = vpop.f32.mrb[0].mxu0
        %1363 = vmatprep.mubr.bf16.mxu0 0
        %1364 = vmatmul.mubr.bf16.gmra.mrb[0].mxu0 %v1279
        %v1365 = vpop.f32.mrb[0].mxu0
        %v1366 = vadd.f32 0.0, %v1365
        %v1367 = vpop.f32.mrb[0].mxu0
        %v1368 = vpop.f32.mrb[0].mxu0
        %v1369 = vadd.f32 0.0, %v1368
        %v1370 = vpop.f32.mrb[0].mxu0
        %1371 = vmatprep.mubr.bf16.mxu0 0
        %1372 = vmatmul.mubr.bf16.gmra.mrb[0].mxu0 %v1280
        %v1373 = vpop.f32.mrb[0].mxu0
        %v1374 = vadd.f32 0.0, %v1373
        %v1375 = vpop.f32.mrb[0].mxu0
        %v1376 = vpop.f32.mrb[0].mxu0
        %v1377 = vadd.f32 0.0, %v1376
        %v1378 = vpop.f32.mrb[0].mxu0
        %1379 = vmatprep.mubr.bf16.mxu0 0
        %1380 = vmatmul.mubr.bf16.gmra.mrb[0].mxu0 %v1281
        %v1381 = vpop.f32.mrb[0].mxu0
        %v1382 = vadd.f32 0.0, %v1381
        %v1383 = vpop.f32.mrb[0].mxu0
        %v1384 = vpop.f32.mrb[0].mxu0
        %v1385 = vadd.f32 0.0, %v1384
        %v1386 = vpop.f32.mrb[0].mxu0
        %1387 = vmatprep.mubr.bf16.mxu0 0
        %1388 = vmatmul.mubr.bf16.gmra.mrb[0].mxu0 %v1282
        %v1389 = vpop.f32.mrb[0].mxu0
        %v1390 = vadd.f32 0.0, %v1389
        %v1391 = vpop.f32.mrb[0].mxu0
        %v1392 = vpop.f32.mrb[0].mxu0
        %v1393 = vadd.f32 0.0, %v1392
        %v1394 = vpop.f32.mrb[0].mxu0
        %1395 = vmatprep.mubr.bf16.mxu0 0
        %1396 = vmatmul.mubr.bf16.gmra.mrb[0].mxu0 %v1283
        %v1397 = vpop.f32.mrb[0].mxu0
        %v1398 = vadd.f32 0.0, %v1397
        %v1399 = vpop.f32.mrb[0].mxu0
        %v1400 = vpop.f32.mrb[0].mxu0
        %v1401 = vadd.f32 0.0, %v1400
        %v1402 = vpop.f32.mrb[0].mxu0
        %1403 = vmatprep.mubr.bf16.mxu0 0
        %1404 = vmatmul.mubr.bf16.gmra.mrb[0].mxu0 %v1284
        %v1405 = vpop.f32.mrb[0].mxu0
        %v1406 = vadd.f32 0.0, %v1405
        %v1407 = vpop.f32.mrb[0].mxu0
        %v1408 = vpop.f32.mrb[0].mxu0
        %v1409 = vadd.f32 0.0, %v1408
        %v1410 = vpop.f32.mrb[0].mxu0
        %1411 = vmatprep.mubr.bf16.mxu0 0
        %1412 = vmatmul.mubr.bf16.gmra.mrb[0].mxu0 %v1285
        %v1413 = vpop.f32.mrb[0].mxu0
        %v1414 = vadd.f32 0.0, %v1413
        %v1415 = vpop.f32.mrb[0].mxu0
        %v1416 = vpop.f32.mrb[0].mxu0
        %v1417 = vadd.f32 0.0, %v1416
        %v1418 = vpop.f32.mrb[0].mxu0
        %1419 = vmatprep.mubr.bf16.mxu0 0
        %1420 = vmatmul.mubr.bf16.gmra.mrb[0].mxu0 %v1286
        %v1421 = vpop.f32.mrb[0].mxu0
        %v1422 = vadd.f32 0.0, %v1421
        %v1423 = vpop.f32.mrb[0].mxu0
        %v1424 = vpop.f32.mrb[0].mxu0
        %v1425 = vadd.f32 0.0, %v1424
        %v1426 = vpop.f32.mrb[0].mxu0
        %1427 = vmatprep.mubr.bf16.mxu0 0
        %1428 = vmatmul.mubr.bf16.gmra.mrb[0].mxu0 %v1287
        %v1429 = vpop.f32.mrb[0].mxu0
        %v1430 = vadd.f32 0.0, %v1429
        %v1431 = vpop.f32.mrb[0].mxu0
        %v1432 = vpop.f32.mrb[0].mxu0
        %v1433 = vadd.f32 0.0, %v1432
        %v1434 = vpop.f32.mrb[0].mxu0
        %1435 = vmatprep.mubr.bf16.mxu0 0
        %1436 = vmatmul.mubr.bf16.gmra.mrb[0].mxu0 %v1288
        %v1437 = vpop.f32.mrb[0].mxu0
        %v1438 = vadd.f32 0.0, %v1437
        %v1439 = vpop.f32.mrb[0].mxu0
        %v1440 = vpop.f32.mrb[0].mxu0
        %v1441 = vadd.f32 0.0, %v1440
        %v1442 = vpop.f32.mrb[0].mxu0
        %1443 = vmatprep.mubr.bf16.mxu0 0
        %1444 = vmatmul.mubr.bf16.gmra.mrb[0].mxu0 %v1289
        %v1445 = vpop.f32.mrb[0].mxu0
        %v1446 = vadd.f32 0.0, %v1445
        %v1447 = vpop.f32.mrb[0].mxu0
        %v1448 = vpop.f32.mrb[0].mxu0
        %v1449 = vadd.f32 0.0, %v1448
        %v1450 = vpop.f32.mrb[0].mxu0
        %1451 = vmatprep.mubr.bf16.mxu0 0
        %1452 = vmatmul.mubr.bf16.gmra.mrb[0].mxu0 %v1290
        %v1453 = vpop.f32.mrb[0].mxu0
        %v1454 = vadd.f32 0.0, %v1453
        %v1455 = vpop.f32.mrb[0].mxu0
        %v1456 = vpop.f32.mrb[0].mxu0
        %v1457 = vadd.f32 0.0, %v1456
        %v1458 = vpop.f32.mrb[0].mxu0
        %1459 = vdwg.mxu0
        %v1460 = vpack.c.bf16 %v1337, %v1334
        %v1461 = vpack.c.bf16 %v1345, %v1342
        %v1462 = vpack.c.bf16 %v1353, %v1350
        %v1463 = vpack.c.bf16 %v1361, %v1358
        %v1464 = vpack.c.bf16 %v1369, %v1366
        %v1465 = vpack.c.bf16 %v1377, %v1374
        %v1466 = vpack.c.bf16 %v1385, %v1382
        %v1467 = vpack.c.bf16 %v1393, %v1390
        %v1468 = vpack.c.bf16 %v1401, %v1398
        %v1469 = vpack.c.bf16 %v1409, %v1406
        %v1470 = vpack.c.bf16 %v1417, %v1414
        %v1471 = vpack.c.bf16 %v1425, %v1422
        %v1472 = vpack.c.bf16 %v1433, %v1430
        %v1473 = vpack.c.bf16 %v1441, %v1438
        %v1474 = vpack.c.bf16 %v1449, %v1446
        %v1475 = vpack.c.bf16 %v1457, %v1454
        %v1476 = vld [vmem:[#allocation8] sm:$0xf]
        %v1477 = vld [vmem:[#allocation8 + $0x4] sm:$0xf]
        %v1478 = vld [vmem:[#allocation8 + $0x8] sm:$0xf]
        %v1479 = vld [vmem:[#allocation8 + $0xc] sm:$0xf]
        %v1480 = vld [vmem:[#allocation8 + $0x10] sm:$0xf]
        %v1481 = vld [vmem:[#allocation8 + $0x14] sm:$0xf]
        %v1482 = vld [vmem:[#allocation8 + $0x18] sm:$0xf]
        %v1483 = vld [vmem:[#allocation8 + $0x1c] sm:$0xf]
        %v1484 = vld [vmem:[#allocation8 + $0x20] sm:$0xf]
        %v1485 = vld [vmem:[#allocation8 + $0x24] sm:$0xf]
        %v1486 = vld [vmem:[#allocation8 + $0x28] sm:$0xf]
        %v1487 = vld [vmem:[#allocation8 + $0x2c] sm:$0xf]
        %v1488 = vld [vmem:[#allocation8 + $0x30] sm:$0xf]
        %v1489 = vld [vmem:[#allocation8 + $0x34] sm:$0xf]
        %v1490 = vld [vmem:[#allocation8 + $0x38] sm:$0xf]
        %v1491 = vld [vmem:[#allocation8 + $0x3c] sm:$0xf]
        %v1492 = vld [vmem:[%s3] sm:$0x1]
        %v1494 = vlaneseq
        %v1495 = vshrl.u32 %v1494, 7
        %v1496 = vsub.s32 0, %v1495
        %v1497 = vrot.slane %v1492, %v1496
        %v1515 = vunpack.c.l.b16 %v1476
        %v1516 = vunpack.c.l.b16 %v1477
        %v1517 = vunpack.c.l.b16 %v1478
        %v1518 = vunpack.c.l.b16 %v1479
        %v1519 = vunpack.c.l.b16 %v1480
        %v1520 = vunpack.c.l.b16 %v1481
        %v1521 = vunpack.c.l.b16 %v1482
        %v1522 = vunpack.c.l.b16 %v1483
        %v1523 = vunpack.c.l.b16 %v1484
        %v1524 = vunpack.c.l.b16 %v1485
        %v1525 = vunpack.c.l.b16 %v1486
        %v1526 = vunpack.c.l.b16 %v1487
        %v1527 = vunpack.c.l.b16 %v1488
        %v1528 = vunpack.c.l.b16 %v1489
        %v1529 = vunpack.c.l.b16 %v1490
        %v1530 = vunpack.c.l.b16 %v1491
        %v1531 = vpack.c.b16 %v1516, %v1515
        %v1532 = vpack.c.b16 %v1518, %v1517
        %v1533 = vpack.c.b16 %v1520, %v1519
        %v1534 = vpack.c.b16 %v1522, %v1521
        %v1535 = vpack.c.b16 %v1524, %v1523
        %v1536 = vpack.c.b16 %v1526, %v1525
        %v1537 = vpack.c.b16 %v1528, %v1527
        %v1538 = vpack.c.b16 %v1530, %v1529
        %1547 = vmatprep.subr.bf16.mxu0 0
        %1548 = vmatpush1.bf16.msra.mxu0 %v1531
        %1549 = vmatprep.subr.bf16.mxu0 0
        %1550 = vmatpush1.bf16.msra.mxu0 %v1532
        %1551 = vmatprep.subr.bf16.mxu0 0
        %1552 = vmatpush1.bf16.msra.mxu0 %v1533
        %1553 = vmatprep.subr.bf16.mxu0 0
        %1554 = vmatpush1.bf16.msra.mxu0 %v1534
        %1555 = vmatprep.subr.bf16.mxu0 0
        %1556 = vmatpush1.bf16.msra.mxu0 %v1535
        %1557 = vmatprep.subr.bf16.mxu0 0
        %1558 = vmatpush1.bf16.msra.mxu0 %v1536
        %1559 = vmatprep.subr.bf16.mxu0 0
        %1560 = vmatpush1.bf16.msra.mxu0 %v1537
        %1561 = vmatprep.subr.bf16.mxu0 0
        %1562 = vmatpush1.bf16.msra.mxu0 %v1538
        %1563 = vmatprep.subr.bf16.mxu0 0
        %1564 = vmatpush1.bf16.msra.mxu0 0
        %1565 = vmatprep.subr.bf16.mxu0 0
        %1566 = vmatpush1.bf16.msra.mxu0 0
        %1567 = vmatprep.subr.bf16.mxu0 0
        %1568 = vmatpush1.bf16.msra.mxu0 0
        %1569 = vmatprep.subr.bf16.mxu0 0
        %1570 = vmatpush1.bf16.msra.mxu0 0
        %1571 = vmatprep.subr.bf16.mxu0 0
        %1572 = vmatpush1.bf16.msra.mxu0 0
        %1573 = vmatprep.subr.bf16.mxu0 0
        %1574 = vmatpush1.bf16.msra.mxu0 0
        %1575 = vmatprep.subr.bf16.mxu0 0
        %1576 = vmatpush1.bf16.msra.mxu0 0
        %1577 = vmatprep.subr.bf16.mxu0 0
        %1578 = vmatpush1.bf16.msra.mxu0 0
        %1579 = vmatprep.mubr.bf16.mxu0 0
        %1580 = vmatmul.mubr.bf16.gmra.mrb[0].mxu0 %v1460
        %v1581 = vpop.f32.mrb[0].mxu0
        %v1582 = vadd.f32 %v1497, %v1581
        %v1583 = vpop.f32.mrb[0].mxu0
        %v1584 = vpop.f32.mrb[0].mxu0
        %v1585 = vadd.f32 %v1497, %v1584
        %v1586 = vpop.f32.mrb[0].mxu0
        %1587 = vmatprep.mubr.bf16.mxu0 0
        %1588 = vmatmul.mubr.bf16.gmra.mrb[0].mxu0 %v1461
        %v1589 = vpop.f32.mrb[0].mxu0
        %v1590 = vadd.f32 %v1497, %v1589
        %v1591 = vpop.f32.mrb[0].mxu0
        %v1592 = vpop.f32.mrb[0].mxu0
        %v1593 = vadd.f32 %v1497, %v1592
        %v1594 = vpop.f32.mrb[0].mxu0
        %1595 = vmatprep.mubr.bf16.mxu0 0
        %1596 = vmatmul.mubr.bf16.gmra.mrb[0].mxu0 %v1462
        %v1597 = vpop.f32.mrb[0].mxu0
        %v1598 = vadd.f32 %v1497, %v1597
        %v1599 = vpop.f32.mrb[0].mxu0
        %v1600 = vpop.f32.mrb[0].mxu0
        %v1601 = vadd.f32 %v1497, %v1600
        %v1602 = vpop.f32.mrb[0].mxu0
        %1603 = vmatprep.mubr.bf16.mxu0 0
        %1604 = vmatmul.mubr.bf16.gmra.mrb[0].mxu0 %v1463
        %v1605 = vpop.f32.mrb[0].mxu0
        %v1606 = vadd.f32 %v1497, %v1605
        %v1607 = vpop.f32.mrb[0].mxu0
        %v1608 = vpop.f32.mrb[0].mxu0
        %v1609 = vadd.f32 %v1497, %v1608
        %v1610 = vpop.f32.mrb[0].mxu0
        %1611 = vmatprep.mubr.bf16.mxu0 0
        %1612 = vmatmul.mubr.bf16.gmra.mrb[0].mxu0 %v1464
        %v1613 = vpop.f32.mrb[0].mxu0
        %v1614 = vadd.f32 %v1497, %v1613
        %v1615 = vpop.f32.mrb[0].mxu0
        %v1616 = vpop.f32.mrb[0].mxu0
        %v1617 = vadd.f32 %v1497, %v1616
        %v1618 = vpop.f32.mrb[0].mxu0
        %1619 = vmatprep.mubr.bf16.mxu0 0
        %1620 = vmatmul.mubr.bf16.gmra.mrb[0].mxu0 %v1465
        %v1621 = vpop.f32.mrb[0].mxu0
        %v1622 = vadd.f32 %v1497, %v1621
        %v1623 = vpop.f32.mrb[0].mxu0
        %v1624 = vpop.f32.mrb[0].mxu0
        %v1625 = vadd.f32 %v1497, %v1624
        %v1626 = vpop.f32.mrb[0].mxu0
        %1627 = vmatprep.mubr.bf16.mxu0 0
        %1628 = vmatmul.mubr.bf16.gmra.mrb[0].mxu0 %v1466
        %v1629 = vpop.f32.mrb[0].mxu0
        %v1630 = vadd.f32 %v1497, %v1629
        %v1631 = vpop.f32.mrb[0].mxu0
        %v1632 = vpop.f32.mrb[0].mxu0
        %v1633 = vadd.f32 %v1497, %v1632
        %v1634 = vpop.f32.mrb[0].mxu0
        %1635 = vmatprep.mubr.bf16.mxu0 0
        %1636 = vmatmul.mubr.bf16.gmra.mrb[0].mxu0 %v1467
        %v1637 = vpop.f32.mrb[0].mxu0
        %v1638 = vadd.f32 %v1497, %v1637
        %v1639 = vpop.f32.mrb[0].mxu0
        %v1640 = vpop.f32.mrb[0].mxu0
        %v1641 = vadd.f32 %v1497, %v1640
        %v1642 = vpop.f32.mrb[0].mxu0
        %1643 = vmatprep.mubr.bf16.mxu0 0
        %1644 = vmatmul.mubr.bf16.gmra.mrb[0].mxu0 %v1468
        %v1645 = vpop.f32.mrb[0].mxu0
        %v1646 = vadd.f32 %v1497, %v1645
        %v1647 = vpop.f32.mrb[0].mxu0
        %v1648 = vpop.f32.mrb[0].mxu0
        %v1649 = vadd.f32 %v1497, %v1648
        %v1650 = vpop.f32.mrb[0].mxu0
        %1651 = vmatprep.mubr.bf16.mxu0 0
        %1652 = vmatmul.mubr.bf16.gmra.mrb[0].mxu0 %v1469
        %v1653 = vpop.f32.mrb[0].mxu0
        %v1654 = vadd.f32 %v1497, %v1653
        %v1655 = vpop.f32.mrb[0].mxu0
        %v1656 = vpop.f32.mrb[0].mxu0
        %v1657 = vadd.f32 %v1497, %v1656
        %v1658 = vpop.f32.mrb[0].mxu0
        %1659 = vmatprep.mubr.bf16.mxu0 0
        %1660 = vmatmul.mubr.bf16.gmra.mrb[0].mxu0 %v1470
        %v1661 = vpop.f32.mrb[0].mxu0
        %v1662 = vadd.f32 %v1497, %v1661
        %v1663 = vpop.f32.mrb[0].mxu0
        %v1664 = vpop.f32.mrb[0].mxu0
        %v1665 = vadd.f32 %v1497, %v1664
        %v1666 = vpop.f32.mrb[0].mxu0
        %1667 = vmatprep.mubr.bf16.mxu0 0
        %1668 = vmatmul.mubr.bf16.gmra.mrb[0].mxu0 %v1471
        %v1669 = vpop.f32.mrb[0].mxu0
        %v1670 = vadd.f32 %v1497, %v1669
        %v1671 = vpop.f32.mrb[0].mxu0
        %v1672 = vpop.f32.mrb[0].mxu0
        %v1673 = vadd.f32 %v1497, %v1672
        %v1674 = vpop.f32.mrb[0].mxu0
        %1675 = vmatprep.mubr.bf16.mxu0 0
        %1676 = vmatmul.mubr.bf16.gmra.mrb[0].mxu0 %v1472
        %v1677 = vpop.f32.mrb[0].mxu0
        %v1678 = vadd.f32 %v1497, %v1677
        %v1679 = vpop.f32.mrb[0].mxu0
        %v1680 = vpop.f32.mrb[0].mxu0
        %v1681 = vadd.f32 %v1497, %v1680
        %v1682 = vpop.f32.mrb[0].mxu0
        %1683 = vmatprep.mubr.bf16.mxu0 0
        %1684 = vmatmul.mubr.bf16.gmra.mrb[0].mxu0 %v1473
        %v1685 = vpop.f32.mrb[0].mxu0
        %v1686 = vadd.f32 %v1497, %v1685
        %v1687 = vpop.f32.mrb[0].mxu0
        %v1688 = vpop.f32.mrb[0].mxu0
        %v1689 = vadd.f32 %v1497, %v1688
        %v1690 = vpop.f32.mrb[0].mxu0
        %1691 = vmatprep.mubr.bf16.mxu0 0
        %1692 = vmatmul.mubr.bf16.gmra.mrb[0].mxu0 %v1474
        %v1693 = vpop.f32.mrb[0].mxu0
        %v1694 = vadd.f32 %v1497, %v1693
        %v1695 = vpop.f32.mrb[0].mxu0
        %v1696 = vpop.f32.mrb[0].mxu0
        %v1697 = vadd.f32 %v1497, %v1696
        %v1698 = vpop.f32.mrb[0].mxu0
        %1699 = vmatprep.mubr.bf16.mxu0 0
        %1700 = vmatmul.mubr.bf16.gmra.mrb[0].mxu0 %v1475
        %v1701 = vpop.f32.mrb[0].mxu0
        %v1702 = vadd.f32 %v1497, %v1701
        %v1703 = vpop.f32.mrb[0].mxu0
        %v1704 = vpop.f32.mrb[0].mxu0
        %v1705 = vadd.f32 %v1497, %v1704
        %v1706 = vpop.f32.mrb[0].mxu0
        %1707 = vdwg.mxu0
        %v1708 = vld [vmem:[#allocation2] sm:$0x1]
        %v1710 = vlaneseq
        %v1711 = vshrl.u32 %v1710, 7
        %v1712 = vsub.s32 0, %v1711
        %v1713 = vrot.slane %v1708, %v1712
        %1714 = vset.pattern.permute.xlu0 0
        %1715 = vperm.xlu0 %1714, %v1713
        %v1716 = vpop.permute.xlu0 %1715
        %v1718 = vmul.f32 %v1582, %v1716
        %v1719 = vmul.f32 %v1585, %v1716
        %v1720 = vmul.f32 %v1590, %v1716
        %v1721 = vmul.f32 %v1593, %v1716
        %v1722 = vmul.f32 %v1598, %v1716
        %v1723 = vmul.f32 %v1601, %v1716
        %v1724 = vmul.f32 %v1606, %v1716
        %v1725 = vmul.f32 %v1609, %v1716
        %v1726 = vmul.f32 %v1614, %v1716
        %v1727 = vmul.f32 %v1617, %v1716
        %v1728 = vmul.f32 %v1622, %v1716
        %v1729 = vmul.f32 %v1625, %v1716
        %v1730 = vmul.f32 %v1630, %v1716
        %v1731 = vmul.f32 %v1633, %v1716
        %v1732 = vmul.f32 %v1638, %v1716
        %v1733 = vmul.f32 %v1641, %v1716
        %v1734 = vmul.f32 %v1646, %v1716
        %v1735 = vmul.f32 %v1649, %v1716
        %v1736 = vmul.f32 %v1654, %v1716
        %v1737 = vmul.f32 %v1657, %v1716
        %v1738 = vmul.f32 %v1662, %v1716
        %v1739 = vmul.f32 %v1665, %v1716
        %v1740 = vmul.f32 %v1670, %v1716
        %v1741 = vmul.f32 %v1673, %v1716
        %v1742 = vmul.f32 %v1678, %v1716
        %v1743 = vmul.f32 %v1681, %v1716
        %v1744 = vmul.f32 %v1686, %v1716
        %v1745 = vmul.f32 %v1689, %v1716
        %v1746 = vmul.f32 %v1694, %v1716
        %v1747 = vmul.f32 %v1697, %v1716
        %v1748 = vmul.f32 %v1702, %v1716
        %v1749 = vmul.f32 %v1705, %v1716
        %1750 = vst [vmem:[%s315] sm:$0xff] %v1718
        %1751 = vst [vmem:[%s315 + $0x8] sm:$0xff] %v1719
        %1752 = vst [vmem:[%s315 + $0x10] sm:$0xff] %v1720
        %1753 = vst [vmem:[%s315 + $0x18] sm:$0xff] %v1721
        %1754 = vst [vmem:[%s315 + $0x20] sm:$0xff] %v1722
        %1755 = vst [vmem:[%s315 + $0x28] sm:$0xff] %v1723
        %1756 = vst [vmem:[%s315 + $0x30] sm:$0xff] %v1724
        %1757 = vst [vmem:[%s315 + $0x38] sm:$0xff] %v1725
        %1758 = vst [vmem:[%s315 + $0x40] sm:$0xff] %v1726
        %1759 = vst [vmem:[%s315 + $0x48] sm:$0xff] %v1727
        %1760 = vst [vmem:[%s315 + $0x50] sm:$0xff] %v1728
        %1761 = vst [vmem:[%s315 + $0x58] sm:$0xff] %v1729
        %1762 = vst [vmem:[%s315 + $0x60] sm:$0xff] %v1730
        %1763 = vst [vmem:[%s315 + $0x68] sm:$0xff] %v1731
        %1764 = vst [vmem:[%s315 + $0x70] sm:$0xff] %v1732
        %1765 = vst [vmem:[%s315 + $0x78] sm:$0xff] %v1733
        %1766 = vst [vmem:[%s315 + $0x80] sm:$0xff] %v1734
        %1767 = vst [vmem:[%s315 + $0x88] sm:$0xff] %v1735
        %1768 = vst [vmem:[%s315 + $0x90] sm:$0xff] %v1736
        %1769 = vst [vmem:[%s315 + $0x98] sm:$0xff] %v1737
        %1770 = vst [vmem:[%s315 + $0xa0] sm:$0xff] %v1738
        %1771 = vst [vmem:[%s315 + $0xa8] sm:$0xff] %v1739
        %1772 = vst [vmem:[%s315 + $0xb0] sm:$0xff] %v1740
        %1773 = vst [vmem:[%s315 + $0xb8] sm:$0xff] %v1741
        %1774 = vst [vmem:[%s315 + $0xc0] sm:$0xff] %v1742
        %1775 = vst [vmem:[%s315 + $0xc8] sm:$0xff] %v1743
        %1776 = vst [vmem:[%s315 + $0xd0] sm:$0xff] %v1744
        %1777 = vst [vmem:[%s315 + $0xd8] sm:$0xff] %v1745
        %1778 = vst [vmem:[%s315 + $0xe0] sm:$0xff] %v1746
        %1779 = vst [vmem:[%s315 + $0xe8] sm:$0xff] %v1747
        %1780 = vst [vmem:[%s315 + $0xf0] sm:$0xff] %v1748
        %1781 = vst [vmem:[%s315 + $0xf8] sm:$0xff] %v1749
        %s1782 = sand.u32 %s166, 1
        %s1783 = scalar_lea.sflag [#allocation5], %s1782
        %s1784 = sand.u32 %s166, 1
        %s1785 = smul.addr %s1784, 256
        %s1786 = scalar_lea.vmem [#allocation11], %s1785
        // Predicated region
        $region61: #{tpu_custom_call.1} parent=43 // pred_check
          %p1787 = pneg %p176
        $region62: #{tpu_custom_call.1} parent=43 // pred_check_branch
          %1789 = sbr.rel (%p1787) target = $region64
        $region63: #{tpu_custom_call.1} parent=43 // pred_region
          %s1791 = ssub.s32 4096, 4096
          %1792 = vsyncadd %s1783, %s1791
          %s1793 = smul.addr %s27, 32
          %s1794 = smul.addr %s1793, 128
          %s1795 = scalar_lea.hbm %s6, %s1794
          %s1796 = sshll.u32 %s1786, 4
          %s1797 = int_to_ptr.vmem [resolvable:$true] %s1796
          %1802 = dma.vmem_to_hbm [thread:$0]  %s1797, 4096, %s1795, %s1783, 128, 128, 8
        $region64: #{tpu_custom_call.1} parent=43 // pred_fallthru
          _
      $region44: #{tpu_custom_call.1} parent=5 // pred_fallthru
        _
      %p1803 = scmp.le.s32.totalorder 2, %s22
      // Predicated region
      $region65: #{tpu_custom_call.1} parent=5 // pred_check
        %p1804 = pneg %p1803
      $region66: #{tpu_custom_call.1} parent=5 // pred_check_branch
        %1806 = sbr.rel (%p1804) target = $region68
      $region67: #{tpu_custom_call.1} parent=5 // pred_region
        %s1807 = ssub.s32 %s22, 2
        // Predicated region
        $region69: #{tpu_custom_call.1} parent=67 // pred_check
          %p1808 = pneg %p182
        $region70: #{tpu_custom_call.1} parent=67 // pred_check_branch
          %1810 = sbr.rel (%p1808) target = $region72
        $region71: #{tpu_custom_call.1} parent=67 // pred_region
          %s1811 = sand.u32 %s167, 1
          %s1812 = scalar_lea.sflag [#allocation5], %s1811
          %s1813 = sand.u32 %s167, 1
          %s1814 = smul.addr %s1813, 256
          %s1815 = scalar_lea.vmem [#allocation11], %s1814
          %1816 = dma.done %s1812, 4096
        $region72: #{tpu_custom_call.1} parent=67 // pred_fallthru
          _
      $region68: #{tpu_custom_call.1} parent=5 // pred_fallthru
        _
    $region6: #{tpu_custom_call.1} parent=1 // loop_footer
      %s26 = sadd.s32 1, %s22
    $region7: #{tpu_custom_call.1} parent=1 // loop_footer_branch
      %21 = sbr.rel target = $region3
    $region8: #{tpu_custom_call.1} parent=1 // loop_exit
      _
    %1817 = vsyncpa [#allocation4], 1
    %s1818 = scalar_lea.sflag [#allocation4], 1
    %1819 = vsyncpa %s1818, 1
    %1820 = vsyncpa [#allocation7], 1
    %1821 = vsyncpa [#allocation10], 1
    %1822 = vsyncpa [#allocation5], 1
    %s1823 = scalar_lea.sflag [#allocation5], 1
    %1824 = vsyncpa %s1823, 1

</llo_original>
